<compile_context>
chip_gen: v5e
topology: v5e:2x2
jax: 0.10.0
libtpu: 0.0.40
codegen_flags: <defaults>
</compile_context>

<pallas_src>
import functools

import jax
import jax.numpy as jnp
from jax.experimental import pallas as pl
from jax.experimental.pallas import tpu as pltpu


def encoder_kernel(emb_ref, wih_ref, bpre_ref, whhbd_ref, bhhn_ref,
                   wfc_ref, bfc_ref, out_ref, hid_ref, *, L, B, H):
    """Shapes (all f32):
      emb_ref  : (L*B, E)   time-major-flattened embedded tokens
      wih_ref  : (E, 6H)    [W_ih_f^T | W_ih_b^T]
      bpre_ref : (1, 6H)    b_ih + b_hh(r,z) per direction (n-part of b_hh excluded)
      whhbd_ref: (2H, 6H)   block-diag([W_hh_f^T, W_hh_b^T])
      bhhn_ref : (1, 2H)    [b_hh_f_n | b_hh_b_n]
      wfc_ref  : (2H, dec)  fc.weight^T ;  bfc_ref: (1, dec)
      out_ref  : (B, L, 2H) GRU outputs (fwd | bwd), batch-first (module layout)
      hid_ref  : (B, dec)   tanh(fc([h_fwd_final ; h_bwd_final]))
    """
    G = 3 * H

    # --- Hoisted, non-sequential input projection (both directions at once) ---
    gx = jnp.dot(emb_ref[...], wih_ref[...],
                 preferred_element_type=jnp.float32) + bpre_ref[...]     # (L*B, 6H)
    gx_f = gx[:, :G]                                                     # (L*B, 3H)
    gx_b = gx[:, G:]                                                     # (L*B, 3H)

    whh_bd = whhbd_ref[...]                                              # (2H, 6H)
    bhn_f = bhhn_ref[:, 0:H]                                             # (1, H)
    bhn_b = bhhn_ref[:, H:2 * H]                                         # (1, H)

    def gru_gates(gx_t, gh_t, bhn, h_prev):
        # PyTorch gate order (r, z, n); b_ih (+ b_hh for r,z) already folded in gx_t.
        r = jax.nn.sigmoid(gx_t[:, 0:H] + gh_t[:, 0:H])
        z = jax.nn.sigmoid(gx_t[:, H:2 * H] + gh_t[:, H:2 * H])
        n = jnp.tanh(gx_t[:, 2 * H:3 * H] + r * (gh_t[:, 2 * H:3 * H] + bhn))
        return (1.0 - z) * n + z * h_prev

    h_f = jnp.zeros((B, H), jnp.float32)
    h_b = jnp.zeros((B, H), jnp.float32)
    outs_f = [None] * L
    outs_b = [None] * L

    # Static (fully unrolled) time loop.  Forward step t and backward step
    # L-1-t are independent, so they are interleaved and share ONE
    # block-diagonal hidden-state matmul on the serial critical path.
    for t in range(L):
        tb = L - 1 - t
        h_cat = jnp.concatenate([h_f, h_b], axis=-1)                     # (B, 2H)
        gh = jnp.dot(h_cat, whh_bd, preferred_element_type=jnp.float32)  # (B, 6H)
        h_f = gru_gates(gx_f[t * B:(t + 1) * B], gh[:, :G], bhn_f, h_f)
        h_b = gru_gates(gx_b[tb * B:(tb + 1) * B], gh[:, G:], bhn_b, h_b)
        outs_f[t] = h_f
        outs_b[tb] = h_b

    # Single lane-dense store of the full output slab, already batch-first
    # (B, L, 2H), so the wrapper needs no transpose / concat / extra HBM pass.
    out_ref[...] = jnp.stack(
        [jnp.concatenate([outs_f[t], outs_b[t]], axis=-1) for t in range(L)],
        axis=1)                                                          # (B, L, 2H)

    # Decoder-init head: tanh(fc([h_f_final ; h_b_final])).
    h_cat = jnp.concatenate([h_f, h_b], axis=-1)                         # (B, 2H)
    hid_ref[...] = jnp.tanh(
        jnp.dot(h_cat, wfc_ref[...], preferred_element_type=jnp.float32)
        + bfc_ref[...])


def init_params(key, input_dim, emb_dim, enc_hid_dim, dec_hid_dim):
    ks = jax.random.split(key, 11)
    s = 0.1
    p = {
        "embedding": s * jax.random.normal(ks[0], (input_dim, emb_dim), jnp.float32),
        # forward direction (PyTorch layout: (3H, in))
        "w_ih_f": s * jax.random.normal(ks[1], (3 * enc_hid_dim, emb_dim), jnp.float32),
        "w_hh_f": s * jax.random.normal(ks[2], (3 * enc_hid_dim, enc_hid_dim), jnp.float32),
        "b_ih_f": s * jax.random.normal(ks[3], (3 * enc_hid_dim,), jnp.float32),
        "b_hh_f": s * jax.random.normal(ks[4], (3 * enc_hid_dim,), jnp.float32),
        # backward direction
        "w_ih_b": s * jax.random.normal(ks[5], (3 * enc_hid_dim, emb_dim), jnp.float32),
        "w_hh_b": s * jax.random.normal(ks[6], (3 * enc_hid_dim, enc_hid_dim), jnp.float32),
        "b_ih_b": s * jax.random.normal(ks[7], (3 * enc_hid_dim,), jnp.float32),
        "b_hh_b": s * jax.random.normal(ks[8], (3 * enc_hid_dim,), jnp.float32),
        # fc: (dec_hid, 2*enc_hid)
        "fc_w": s * jax.random.normal(ks[9], (dec_hid_dim, 2 * enc_hid_dim), jnp.float32),
        "fc_b": s * jax.random.normal(ks[10], (dec_hid_dim,), jnp.float32),
    }
    return p


@jax.jit
def encoder_forward(params, src):
    """src: (B, L) int32 token ids.  Returns (outputs (B, L, 2H), hidden (B, dec))."""
    B, L = src.shape
    emb_table = params["embedding"]
    E = emb_table.shape[1]
    H = params["w_hh_f"].shape[1]
    dec = params["fc_w"].shape[0]

    # Embedding lookup directly in time-major layout (no extra transpose pass).
    # Dropout is eval-mode identity.
    emb_tm = jnp.take(emb_table, src.T, axis=0).astype(jnp.float32)      # (L, B, E)
    emb2d = emb_tm.reshape(L * B, E)

    # ---- Trace-time weight packing (constant-folded under jit) ----
    def pack_dir(d):
        w_ih = params[f"w_ih_{d}"]          # (3H, E)
        w_hh = params[f"w_hh_{d}"]          # (3H, H)
        b_ih = params[f"b_ih_{d}"]          # (3H,)
        b_hh = params[f"b_hh_{d}"]          # (3H,)
        # Fold b_ih (all gates) and b_hh (r,z gates) into the hoisted projection.
        b_pre = b_ih + jnp.concatenate([b_hh[:2 * H], jnp.zeros((H,), b_hh.dtype)])
        return w_ih.T, w_hh.T, b_pre, b_hh[2 * H:]

    wih_f_t, whh_f_t, bpre_f, bhn_f = pack_dir("f")
    wih_b_t, whh_b_t, bpre_b, bhn_b = pack_dir("b")

    wih_cat = jnp.concatenate([wih_f_t, wih_b_t], axis=1)                # (E, 6H)
    bpre_cat = jnp.concatenate([bpre_f, bpre_b]).reshape(1, 6 * H)       # (1, 6H)
    zero_blk = jnp.zeros((H, 3 * H), jnp.float32)
    whh_bd = jnp.concatenate(
        [jnp.concatenate([whh_f_t, zero_blk], axis=1),
         jnp.concatenate([zero_blk, whh_b_t], axis=1)], axis=0)          # (2H, 6H)
    bhhn = jnp.concatenate([bhn_f, bhn_b]).reshape(1, 2 * H)             # (1, 2H)
    wfc_t = params["fc_w"].T                                             # (2H, dec)
    bfc = params["fc_b"].reshape(1, dec)

    vmem = pl.BlockSpec(memory_space=pltpu.MemorySpace.VMEM)
    args = (emb2d, wih_cat, bpre_cat, whh_bd, bhhn, wfc_t, bfc)
    outputs, hidden = pl.pallas_call(
        functools.partial(encoder_kernel, L=L, B=B, H=H),
        out_shape=(
            jax.ShapeDtypeStruct((B, L, 2 * H), jnp.float32),
            jax.ShapeDtypeStruct((B, dec), jnp.float32),
        ),
        in_specs=[vmem] * len(args),
        out_specs=(vmem, vmem),
    )(*args)
    return outputs, hidden


def _reference_forward(params, src):
    """Pure-JAX reference mirroring torch.nn.GRU(bidirectional, batch_first)."""
    emb = jnp.take(params["embedding"], src, axis=0)                     # (B, L, E)
    B, L, _ = emb.shape
    H = params["w_hh_f"].shape[1]

    def run(dir_key, reverse):
        w_ih, w_hh = params[f"w_ih_{dir_key}"], params[f"w_hh_{dir_key}"]
        b_ih, b_hh = params[f"b_ih_{dir_key}"], params[f"b_hh_{dir_key}"]
        h = jnp.zeros((B, H), jnp.float32)
        outs = []
        ts = range(L - 1, -1, -1) if reverse else range(L)
        for t in ts:
            x = emb[:, t, :]
            gx = x @ w_ih.T + b_ih
            gh = h @ w_hh.T + b_hh
            r = jax.nn.sigmoid(gx[:, :H] + gh[:, :H])
            z = jax.nn.sigmoid(gx[:, H:2 * H] + gh[:, H:2 * H])
            n = jnp.tanh(gx[:, 2 * H:] + r * gh[:, 2 * H:])
            h = (1.0 - z) * n + z * h
            outs.append((t, h))
        outs = [o for _, o in sorted(outs, key=lambda p: p[0])]
        return jnp.stack(outs, axis=1), h                                # (B, L, H), final h

    of, hf = run("f", False)
    ob, hb = run("b", True)
    outputs = jnp.concatenate([of, ob], axis=-1)
    hidden = jnp.tanh(jnp.concatenate([hf, hb], axis=-1) @ params["fc_w"].T + params["fc_b"])
    return outputs, hidden


if __name__ == "__main__":
    INPUT_DIM = 50     # vocab size
    EMB_DIM = 32
    ENC_HID_DIM = 32
    DEC_HID_DIM = 32
    B, L = 2, 8

    key = jax.random.PRNGKey(0)
    kp, ks = jax.random.split(key)
    params = init_params(kp, INPUT_DIM, EMB_DIM, ENC_HID_DIM, DEC_HID_DIM)
    src = jax.random.randint(ks, (B, L), 0, INPUT_DIM, dtype=jnp.int32)

    outputs, hidden = jax.block_until_ready(encoder_forward(params, src))
    assert outputs.shape == (B, L, 2 * ENC_HID_DIM)
    assert hidden.shape == (B, DEC_HID_DIM)

    ref_out, ref_hid = _reference_forward(params, src)
    assert jnp.allclose(outputs, ref_out, rtol=1e-5, atol=1e-5)
    assert jnp.allclose(hidden, ref_hid, rtol=1e-5, atol=1e-5)

    print("KERNEL_OK")
</pallas_src>

<mosaic_0001>
module attributes {stable_mosaic.version = 11 : i64} {
  func.func @encoder_kernel(%arg0: memref<16x32xf32, #tpu.memory_space<vmem>>, %arg1: memref<32x192xf32, #tpu.memory_space<vmem>>, %arg2: memref<1x192xf32, #tpu.memory_space<vmem>>, %arg3: memref<64x192xf32, #tpu.memory_space<vmem>>, %arg4: memref<1x64xf32, #tpu.memory_space<vmem>>, %arg5: memref<64x32xf32, #tpu.memory_space<vmem>>, %arg6: memref<1x32xf32, #tpu.memory_space<vmem>>, %arg7: memref<2x8x64xf32, #tpu.memory_space<vmem>>, %arg8: memref<2x32xf32, #tpu.memory_space<vmem>>) attributes {dimension_semantics = [], scalar_prefetch = 0 : i64, scratch_operands = 0 : i64, tpu.core_type = #tpu.core_type<tc>} {
    %c0 = arith.constant 0 : index
    %c0_0 = arith.constant 0 : index
    %0 = vector.load %arg0[%c0, %c0_0] : memref<16x32xf32, #tpu.memory_space<vmem>>, vector<16x32xf32>
    %c0_1 = arith.constant 0 : index
    %c0_2 = arith.constant 0 : index
    %1 = vector.load %arg1[%c0_1, %c0_2] : memref<32x192xf32, #tpu.memory_space<vmem>>, vector<32x192xf32>
    %cst = arith.constant dense<0.000000e+00> : vector<16x192xf32>
    %2 = tpu.matmul %0, %1, %cst {dimension_numbers = #tpu.dot_dimension_numbers<[1], [0], [0], [1], [0, 0, 1, 1], [], []>} : vector<16x32xf32>, vector<32x192xf32>, vector<16x192xf32> -> vector<16x192xf32>
    %c0_3 = arith.constant 0 : index
    %c0_4 = arith.constant 0 : index
    %3 = vector.load %arg2[%c0_3, %c0_4] : memref<1x192xf32, #tpu.memory_space<vmem>>, vector<1x192xf32>
    %4 = vector.broadcast %3 : vector<1x192xf32> to vector<16x192xf32>
    %5 = arith.addf %2, %4 : vector<16x192xf32>
    %6 = vector.extract_strided_slice %5 {offsets = [0, 0], sizes = [16, 96], strides = [1, 1]} : vector<16x192xf32> to vector<16x96xf32>
    %7 = vector.extract_strided_slice %5 {offsets = [0, 96], sizes = [16, 96], strides = [1, 1]} : vector<16x192xf32> to vector<16x96xf32>
    %c0_5 = arith.constant 0 : index
    %c0_6 = arith.constant 0 : index
    %8 = vector.load %arg3[%c0_5, %c0_6] : memref<64x192xf32, #tpu.memory_space<vmem>>, vector<64x192xf32>
    %c0_7 = arith.constant 0 : index
    %c0_8 = arith.constant 0 : index
    %9 = vector.load %arg4[%c0_7, %c0_8] : memref<1x64xf32, #tpu.memory_space<vmem>>, vector<1x32xf32>
    %c0_9 = arith.constant 0 : index
    %c32 = arith.constant 32 : index
    %10 = vector.load %arg4[%c0_9, %c32] : memref<1x64xf32, #tpu.memory_space<vmem>>, vector<1x32xf32>
    %cst_10 = arith.constant 0.000000e+00 : f32
    %11 = vector.broadcast %cst_10 : f32 to vector<2x32xf32>
    %cst_11 = arith.constant 0.000000e+00 : f32
    %12 = vector.broadcast %cst_11 : f32 to vector<2x32xf32>
    %13 = tpu.concatenate %11, %12 in 1 : vector<2x32xf32>, vector<2x32xf32> -> vector<2x64xf32>
    %cst_12 = arith.constant dense<0.000000e+00> : vector<2x192xf32>
    %14 = tpu.matmul %13, %8, %cst_12 {dimension_numbers = #tpu.dot_dimension_numbers<[1], [0], [0], [1], [0, 0, 1, 1], [], []>} : vector<2x64xf32>, vector<64x192xf32>, vector<2x192xf32> -> vector<2x192xf32>
    %15 = vector.extract_strided_slice %6 {offsets = [0, 0], sizes = [2, 96], strides = [1, 1]} : vector<16x96xf32> to vector<2x96xf32>
    %16 = vector.extract_strided_slice %14 {offsets = [0, 0], sizes = [2, 96], strides = [1, 1]} : vector<2x192xf32> to vector<2x96xf32>
    %17 = vector.extract_strided_slice %15 {offsets = [0, 0], sizes = [2, 32], strides = [1, 1]} : vector<2x96xf32> to vector<2x32xf32>
    %18 = vector.extract_strided_slice %16 {offsets = [0, 0], sizes = [2, 32], strides = [1, 1]} : vector<2x96xf32> to vector<2x32xf32>
    %19 = arith.addf %17, %18 : vector<2x32xf32>
    %20 = arith.negf %19 : vector<2x32xf32>
    %21 = math.exp %20 : vector<2x32xf32>
    %cst_13 = arith.constant 1.000000e+00 : f32
    %22 = vector.broadcast %cst_13 : f32 to vector<2x32xf32>
    %23 = arith.addf %22, %21 : vector<2x32xf32>
    %24 = arith.divf %22, %23 : vector<2x32xf32>
    %25 = vector.extract_strided_slice %15 {offsets = [0, 32], sizes = [2, 32], strides = [1, 1]} : vector<2x96xf32> to vector<2x32xf32>
    %26 = vector.extract_strided_slice %16 {offsets = [0, 32], sizes = [2, 32], strides = [1, 1]} : vector<2x96xf32> to vector<2x32xf32>
    %27 = arith.addf %25, %26 : vector<2x32xf32>
    %28 = arith.negf %27 : vector<2x32xf32>
    %29 = math.exp %28 : vector<2x32xf32>
    %cst_14 = arith.constant 1.000000e+00 : f32
    %30 = vector.broadcast %cst_14 : f32 to vector<2x32xf32>
    %31 = arith.addf %30, %29 : vector<2x32xf32>
    %32 = arith.divf %30, %31 : vector<2x32xf32>
    %33 = vector.extract_strided_slice %15 {offsets = [0, 64], sizes = [2, 32], strides = [1, 1]} : vector<2x96xf32> to vector<2x32xf32>
    %34 = vector.extract_strided_slice %16 {offsets = [0, 64], sizes = [2, 32], strides = [1, 1]} : vector<2x96xf32> to vector<2x32xf32>
    %35 = vector.broadcast %9 : vector<1x32xf32> to vector<2x32xf32>
    %36 = arith.addf %34, %35 : vector<2x32xf32>
    %37 = arith.mulf %24, %36 : vector<2x32xf32>
    %38 = arith.addf %33, %37 : vector<2x32xf32>
    %39 = math.tanh %38 : vector<2x32xf32>
    %cst_15 = arith.constant 1.000000e+00 : f32
    %40 = vector.broadcast %cst_15 : f32 to vector<2x32xf32>
    %41 = arith.subf %40, %32 : vector<2x32xf32>
    %42 = arith.mulf %41, %39 : vector<2x32xf32>
    %43 = arith.mulf %32, %11 : vector<2x32xf32>
    %44 = arith.addf %42, %43 : vector<2x32xf32>
    %45 = vector.extract_strided_slice %7 {offsets = [14, 0], sizes = [2, 96], strides = [1, 1]} : vector<16x96xf32> to vector<2x96xf32>
    %46 = vector.extract_strided_slice %14 {offsets = [0, 96], sizes = [2, 96], strides = [1, 1]} : vector<2x192xf32> to vector<2x96xf32>
    %47 = vector.extract_strided_slice %45 {offsets = [0, 0], sizes = [2, 32], strides = [1, 1]} : vector<2x96xf32> to vector<2x32xf32>
    %48 = vector.extract_strided_slice %46 {offsets = [0, 0], sizes = [2, 32], strides = [1, 1]} : vector<2x96xf32> to vector<2x32xf32>
    %49 = arith.addf %47, %48 : vector<2x32xf32>
    %50 = arith.negf %49 : vector<2x32xf32>
    %51 = math.exp %50 : vector<2x32xf32>
    %cst_16 = arith.constant 1.000000e+00 : f32
    %52 = vector.broadcast %cst_16 : f32 to vector<2x32xf32>
    %53 = arith.addf %52, %51 : vector<2x32xf32>
    %54 = arith.divf %52, %53 : vector<2x32xf32>
    %55 = vector.extract_strided_slice %45 {offsets = [0, 32], sizes = [2, 32], strides = [1, 1]} : vector<2x96xf32> to vector<2x32xf32>
    %56 = vector.extract_strided_slice %46 {offsets = [0, 32], sizes = [2, 32], strides = [1, 1]} : vector<2x96xf32> to vector<2x32xf32>
    %57 = arith.addf %55, %56 : vector<2x32xf32>
    %58 = arith.negf %57 : vector<2x32xf32>
    %59 = math.exp %58 : vector<2x32xf32>
    %cst_17 = arith.constant 1.000000e+00 : f32
    %60 = vector.broadcast %cst_17 : f32 to vector<2x32xf32>
    %61 = arith.addf %60, %59 : vector<2x32xf32>
    %62 = arith.divf %60, %61 : vector<2x32xf32>
    %63 = vector.extract_strided_slice %45 {offsets = [0, 64], sizes = [2, 32], strides = [1, 1]} : vector<2x96xf32> to vector<2x32xf32>
    %64 = vector.extract_strided_slice %46 {offsets = [0, 64], sizes = [2, 32], strides = [1, 1]} : vector<2x96xf32> to vector<2x32xf32>
    %65 = vector.broadcast %10 : vector<1x32xf32> to vector<2x32xf32>
    %66 = arith.addf %64, %65 : vector<2x32xf32>
    %67 = arith.mulf %54, %66 : vector<2x32xf32>
    %68 = arith.addf %63, %67 : vector<2x32xf32>
    %69 = math.tanh %68 : vector<2x32xf32>
    %cst_18 = arith.constant 1.000000e+00 : f32
    %70 = vector.broadcast %cst_18 : f32 to vector<2x32xf32>
    %71 = arith.subf %70, %62 : vector<2x32xf32>
    %72 = arith.mulf %71, %69 : vector<2x32xf32>
    %73 = arith.mulf %62, %12 : vector<2x32xf32>
    %74 = arith.addf %72, %73 : vector<2x32xf32>
    %75 = tpu.concatenate %44, %74 in 1 : vector<2x32xf32>, vector<2x32xf32> -> vector<2x64xf32>
    %cst_19 = arith.constant dense<0.000000e+00> : vector<2x192xf32>
    %76 = tpu.matmul %75, %8, %cst_19 {dimension_numbers = #tpu.dot_dimension_numbers<[1], [0], [0], [1], [0, 0, 1, 1], [], []>} : vector<2x64xf32>, vector<64x192xf32>, vector<2x192xf32> -> vector<2x192xf32>
    %77 = vector.extract_strided_slice %6 {offsets = [2, 0], sizes = [2, 96], strides = [1, 1]} : vector<16x96xf32> to vector<2x96xf32>
    %78 = vector.extract_strided_slice %76 {offsets = [0, 0], sizes = [2, 96], strides = [1, 1]} : vector<2x192xf32> to vector<2x96xf32>
    %79 = vector.extract_strided_slice %77 {offsets = [0, 0], sizes = [2, 32], strides = [1, 1]} : vector<2x96xf32> to vector<2x32xf32>
    %80 = vector.extract_strided_slice %78 {offsets = [0, 0], sizes = [2, 32], strides = [1, 1]} : vector<2x96xf32> to vector<2x32xf32>
    %81 = arith.addf %79, %80 : vector<2x32xf32>
    %82 = arith.negf %81 : vector<2x32xf32>
    %83 = math.exp %82 : vector<2x32xf32>
    %cst_20 = arith.constant 1.000000e+00 : f32
    %84 = vector.broadcast %cst_20 : f32 to vector<2x32xf32>
    %85 = arith.addf %84, %83 : vector<2x32xf32>
    %86 = arith.divf %84, %85 : vector<2x32xf32>
    %87 = vector.extract_strided_slice %77 {offsets = [0, 32], sizes = [2, 32], strides = [1, 1]} : vector<2x96xf32> to vector<2x32xf32>
    %88 = vector.extract_strided_slice %78 {offsets = [0, 32], sizes = [2, 32], strides = [1, 1]} : vector<2x96xf32> to vector<2x32xf32>
    %89 = arith.addf %87, %88 : vector<2x32xf32>
    %90 = arith.negf %89 : vector<2x32xf32>
    %91 = math.exp %90 : vector<2x32xf32>
    %cst_21 = arith.constant 1.000000e+00 : f32
    %92 = vector.broadcast %cst_21 : f32 to vector<2x32xf32>
    %93 = arith.addf %92, %91 : vector<2x32xf32>
    %94 = arith.divf %92, %93 : vector<2x32xf32>
    %95 = vector.extract_strided_slice %77 {offsets = [0, 64], sizes = [2, 32], strides = [1, 1]} : vector<2x96xf32> to vector<2x32xf32>
    %96 = vector.extract_strided_slice %78 {offsets = [0, 64], sizes = [2, 32], strides = [1, 1]} : vector<2x96xf32> to vector<2x32xf32>
    %97 = vector.broadcast %9 : vector<1x32xf32> to vector<2x32xf32>
    %98 = arith.addf %96, %97 : vector<2x32xf32>
    %99 = arith.mulf %86, %98 : vector<2x32xf32>
    %100 = arith.addf %95, %99 : vector<2x32xf32>
    %101 = math.tanh %100 : vector<2x32xf32>
    %cst_22 = arith.constant 1.000000e+00 : f32
    %102 = vector.broadcast %cst_22 : f32 to vector<2x32xf32>
    %103 = arith.subf %102, %94 : vector<2x32xf32>
    %104 = arith.mulf %103, %101 : vector<2x32xf32>
    %105 = arith.mulf %94, %44 : vector<2x32xf32>
    %106 = arith.addf %104, %105 : vector<2x32xf32>
    %107 = vector.extract_strided_slice %7 {offsets = [12, 0], sizes = [2, 96], strides = [1, 1]} : vector<16x96xf32> to vector<2x96xf32>
    %108 = vector.extract_strided_slice %76 {offsets = [0, 96], sizes = [2, 96], strides = [1, 1]} : vector<2x192xf32> to vector<2x96xf32>
    %109 = vector.extract_strided_slice %107 {offsets = [0, 0], sizes = [2, 32], strides = [1, 1]} : vector<2x96xf32> to vector<2x32xf32>
    %110 = vector.extract_strided_slice %108 {offsets = [0, 0], sizes = [2, 32], strides = [1, 1]} : vector<2x96xf32> to vector<2x32xf32>
    %111 = arith.addf %109, %110 : vector<2x32xf32>
    %112 = arith.negf %111 : vector<2x32xf32>
    %113 = math.exp %112 : vector<2x32xf32>
    %cst_23 = arith.constant 1.000000e+00 : f32
    %114 = vector.broadcast %cst_23 : f32 to vector<2x32xf32>
    %115 = arith.addf %114, %113 : vector<2x32xf32>
    %116 = arith.divf %114, %115 : vector<2x32xf32>
    %117 = vector.extract_strided_slice %107 {offsets = [0, 32], sizes = [2, 32], strides = [1, 1]} : vector<2x96xf32> to vector<2x32xf32>
    %118 = vector.extract_strided_slice %108 {offsets = [0, 32], sizes = [2, 32], strides = [1, 1]} : vector<2x96xf32> to vector<2x32xf32>
    %119 = arith.addf %117, %118 : vector<2x32xf32>
    %120 = arith.negf %119 : vector<2x32xf32>
    %121 = math.exp %120 : vector<2x32xf32>
    %cst_24 = arith.constant 1.000000e+00 : f32
    %122 = vector.broadcast %cst_24 : f32 to vector<2x32xf32>
    %123 = arith.addf %122, %121 : vector<2x32xf32>
    %124 = arith.divf %122, %123 : vector<2x32xf32>
    %125 = vector.extract_strided_slice %107 {offsets = [0, 64], sizes = [2, 32], strides = [1, 1]} : vector<2x96xf32> to vector<2x32xf32>
    %126 = vector.extract_strided_slice %108 {offsets = [0, 64], sizes = [2, 32], strides = [1, 1]} : vector<2x96xf32> to vector<2x32xf32>
    %127 = vector.broadcast %10 : vector<1x32xf32> to vector<2x32xf32>
    %128 = arith.addf %126, %127 : vector<2x32xf32>
    %129 = arith.mulf %116, %128 : vector<2x32xf32>
    %130 = arith.addf %125, %129 : vector<2x32xf32>
    %131 = math.tanh %130 : vector<2x32xf32>
    %cst_25 = arith.constant 1.000000e+00 : f32
    %132 = vector.broadcast %cst_25 : f32 to vector<2x32xf32>
    %133 = arith.subf %132, %124 : vector<2x32xf32>
    %134 = arith.mulf %133, %131 : vector<2x32xf32>
    %135 = arith.mulf %124, %74 : vector<2x32xf32>
    %136 = arith.addf %134, %135 : vector<2x32xf32>
    %137 = tpu.concatenate %106, %136 in 1 : vector<2x32xf32>, vector<2x32xf32> -> vector<2x64xf32>
    %cst_26 = arith.constant dense<0.000000e+00> : vector<2x192xf32>
    %138 = tpu.matmul %137, %8, %cst_26 {dimension_numbers = #tpu.dot_dimension_numbers<[1], [0], [0], [1], [0, 0, 1, 1], [], []>} : vector<2x64xf32>, vector<64x192xf32>, vector<2x192xf32> -> vector<2x192xf32>
    %139 = vector.extract_strided_slice %6 {offsets = [4, 0], sizes = [2, 96], strides = [1, 1]} : vector<16x96xf32> to vector<2x96xf32>
    %140 = vector.extract_strided_slice %138 {offsets = [0, 0], sizes = [2, 96], strides = [1, 1]} : vector<2x192xf32> to vector<2x96xf32>
    %141 = vector.extract_strided_slice %139 {offsets = [0, 0], sizes = [2, 32], strides = [1, 1]} : vector<2x96xf32> to vector<2x32xf32>
    %142 = vector.extract_strided_slice %140 {offsets = [0, 0], sizes = [2, 32], strides = [1, 1]} : vector<2x96xf32> to vector<2x32xf32>
    %143 = arith.addf %141, %142 : vector<2x32xf32>
    %144 = arith.negf %143 : vector<2x32xf32>
    %145 = math.exp %144 : vector<2x32xf32>
    %cst_27 = arith.constant 1.000000e+00 : f32
    %146 = vector.broadcast %cst_27 : f32 to vector<2x32xf32>
    %147 = arith.addf %146, %145 : vector<2x32xf32>
    %148 = arith.divf %146, %147 : vector<2x32xf32>
    %149 = vector.extract_strided_slice %139 {offsets = [0, 32], sizes = [2, 32], strides = [1, 1]} : vector<2x96xf32> to vector<2x32xf32>
    %150 = vector.extract_strided_slice %140 {offsets = [0, 32], sizes = [2, 32], strides = [1, 1]} : vector<2x96xf32> to vector<2x32xf32>
    %151 = arith.addf %149, %150 : vector<2x32xf32>
    %152 = arith.negf %151 : vector<2x32xf32>
    %153 = math.exp %152 : vector<2x32xf32>
    %cst_28 = arith.constant 1.000000e+00 : f32
    %154 = vector.broadcast %cst_28 : f32 to vector<2x32xf32>
    %155 = arith.addf %154, %153 : vector<2x32xf32>
    %156 = arith.divf %154, %155 : vector<2x32xf32>
    %157 = vector.extract_strided_slice %139 {offsets = [0, 64], sizes = [2, 32], strides = [1, 1]} : vector<2x96xf32> to vector<2x32xf32>
    %158 = vector.extract_strided_slice %140 {offsets = [0, 64], sizes = [2, 32], strides = [1, 1]} : vector<2x96xf32> to vector<2x32xf32>
    %159 = vector.broadcast %9 : vector<1x32xf32> to vector<2x32xf32>
    %160 = arith.addf %158, %159 : vector<2x32xf32>
    %161 = arith.mulf %148, %160 : vector<2x32xf32>
    %162 = arith.addf %157, %161 : vector<2x32xf32>
    %163 = math.tanh %162 : vector<2x32xf32>
    %cst_29 = arith.constant 1.000000e+00 : f32
    %164 = vector.broadcast %cst_29 : f32 to vector<2x32xf32>
    %165 = arith.subf %164, %156 : vector<2x32xf32>
    %166 = arith.mulf %165, %163 : vector<2x32xf32>
    %167 = arith.mulf %156, %106 : vector<2x32xf32>
    %168 = arith.addf %166, %167 : vector<2x32xf32>
    %169 = vector.extract_strided_slice %7 {offsets = [10, 0], sizes = [2, 96], strides = [1, 1]} : vector<16x96xf32> to vector<2x96xf32>
    %170 = vector.extract_strided_slice %138 {offsets = [0, 96], sizes = [2, 96], strides = [1, 1]} : vector<2x192xf32> to vector<2x96xf32>
    %171 = vector.extract_strided_slice %169 {offsets = [0, 0], sizes = [2, 32], strides = [1, 1]} : vector<2x96xf32> to vector<2x32xf32>
    %172 = vector.extract_strided_slice %170 {offsets = [0, 0], sizes = [2, 32], strides = [1, 1]} : vector<2x96xf32> to vector<2x32xf32>
    %173 = arith.addf %171, %172 : vector<2x32xf32>
    %174 = arith.negf %173 : vector<2x32xf32>
    %175 = math.exp %174 : vector<2x32xf32>
    %cst_30 = arith.constant 1.000000e+00 : f32
    %176 = vector.broadcast %cst_30 : f32 to vector<2x32xf32>
    %177 = arith.addf %176, %175 : vector<2x32xf32>
    %178 = arith.divf %176, %177 : vector<2x32xf32>
    %179 = vector.extract_strided_slice %169 {offsets = [0, 32], sizes = [2, 32], strides = [1, 1]} : vector<2x96xf32> to vector<2x32xf32>
    %180 = vector.extract_strided_slice %170 {offsets = [0, 32], sizes = [2, 32], strides = [1, 1]} : vector<2x96xf32> to vector<2x32xf32>
    %181 = arith.addf %179, %180 : vector<2x32xf32>
    %182 = arith.negf %181 : vector<2x32xf32>
    %183 = math.exp %182 : vector<2x32xf32>
    %cst_31 = arith.constant 1.000000e+00 : f32
    %184 = vector.broadcast %cst_31 : f32 to vector<2x32xf32>
    %185 = arith.addf %184, %183 : vector<2x32xf32>
    %186 = arith.divf %184, %185 : vector<2x32xf32>
    %187 = vector.extract_strided_slice %169 {offsets = [0, 64], sizes = [2, 32], strides = [1, 1]} : vector<2x96xf32> to vector<2x32xf32>
    %188 = vector.extract_strided_slice %170 {offsets = [0, 64], sizes = [2, 32], strides = [1, 1]} : vector<2x96xf32> to vector<2x32xf32>
    %189 = vector.broadcast %10 : vector<1x32xf32> to vector<2x32xf32>
    %190 = arith.addf %188, %189 : vector<2x32xf32>
    %191 = arith.mulf %178, %190 : vector<2x32xf32>
    %192 = arith.addf %187, %191 : vector<2x32xf32>
    %193 = math.tanh %192 : vector<2x32xf32>
    %cst_32 = arith.constant 1.000000e+00 : f32
    %194 = vector.broadcast %cst_32 : f32 to vector<2x32xf32>
    %195 = arith.subf %194, %186 : vector<2x32xf32>
    %196 = arith.mulf %195, %193 : vector<2x32xf32>
    %197 = arith.mulf %186, %136 : vector<2x32xf32>
    %198 = arith.addf %196, %197 : vector<2x32xf32>
    %199 = tpu.concatenate %168, %198 in 1 : vector<2x32xf32>, vector<2x32xf32> -> vector<2x64xf32>
    %cst_33 = arith.constant dense<0.000000e+00> : vector<2x192xf32>
    %200 = tpu.matmul %199, %8, %cst_33 {dimension_numbers = #tpu.dot_dimension_numbers<[1], [0], [0], [1], [0, 0, 1, 1], [], []>} : vector<2x64xf32>, vector<64x192xf32>, vector<2x192xf32> -> vector<2x192xf32>
    %201 = vector.extract_strided_slice %6 {offsets = [6, 0], sizes = [2, 96], strides = [1, 1]} : vector<16x96xf32> to vector<2x96xf32>
    %202 = vector.extract_strided_slice %200 {offsets = [0, 0], sizes = [2, 96], strides = [1, 1]} : vector<2x192xf32> to vector<2x96xf32>
    %203 = vector.extract_strided_slice %201 {offsets = [0, 0], sizes = [2, 32], strides = [1, 1]} : vector<2x96xf32> to vector<2x32xf32>
    %204 = vector.extract_strided_slice %202 {offsets = [0, 0], sizes = [2, 32], strides = [1, 1]} : vector<2x96xf32> to vector<2x32xf32>
    %205 = arith.addf %203, %204 : vector<2x32xf32>
    %206 = arith.negf %205 : vector<2x32xf32>
    %207 = math.exp %206 : vector<2x32xf32>
    %cst_34 = arith.constant 1.000000e+00 : f32
    %208 = vector.broadcast %cst_34 : f32 to vector<2x32xf32>
    %209 = arith.addf %208, %207 : vector<2x32xf32>
    %210 = arith.divf %208, %209 : vector<2x32xf32>
    %211 = vector.extract_strided_slice %201 {offsets = [0, 32], sizes = [2, 32], strides = [1, 1]} : vector<2x96xf32> to vector<2x32xf32>
    %212 = vector.extract_strided_slice %202 {offsets = [0, 32], sizes = [2, 32], strides = [1, 1]} : vector<2x96xf32> to vector<2x32xf32>
    %213 = arith.addf %211, %212 : vector<2x32xf32>
    %214 = arith.negf %213 : vector<2x32xf32>
    %215 = math.exp %214 : vector<2x32xf32>
    %cst_35 = arith.constant 1.000000e+00 : f32
    %216 = vector.broadcast %cst_35 : f32 to vector<2x32xf32>
    %217 = arith.addf %216, %215 : vector<2x32xf32>
    %218 = arith.divf %216, %217 : vector<2x32xf32>
    %219 = vector.extract_strided_slice %201 {offsets = [0, 64], sizes = [2, 32], strides = [1, 1]} : vector<2x96xf32> to vector<2x32xf32>
    %220 = vector.extract_strided_slice %202 {offsets = [0, 64], sizes = [2, 32], strides = [1, 1]} : vector<2x96xf32> to vector<2x32xf32>
    %221 = vector.broadcast %9 : vector<1x32xf32> to vector<2x32xf32>
    %222 = arith.addf %220, %221 : vector<2x32xf32>
    %223 = arith.mulf %210, %222 : vector<2x32xf32>
    %224 = arith.addf %219, %223 : vector<2x32xf32>
    %225 = math.tanh %224 : vector<2x32xf32>
    %cst_36 = arith.constant 1.000000e+00 : f32
    %226 = vector.broadcast %cst_36 : f32 to vector<2x32xf32>
    %227 = arith.subf %226, %218 : vector<2x32xf32>
    %228 = arith.mulf %227, %225 : vector<2x32xf32>
    %229 = arith.mulf %218, %168 : vector<2x32xf32>
    %230 = arith.addf %228, %229 : vector<2x32xf32>
    %231 = vector.extract_strided_slice %7 {offsets = [8, 0], sizes = [2, 96], strides = [1, 1]} : vector<16x96xf32> to vector<2x96xf32>
    %232 = vector.extract_strided_slice %200 {offsets = [0, 96], sizes = [2, 96], strides = [1, 1]} : vector<2x192xf32> to vector<2x96xf32>
    %233 = vector.extract_strided_slice %231 {offsets = [0, 0], sizes = [2, 32], strides = [1, 1]} : vector<2x96xf32> to vector<2x32xf32>
    %234 = vector.extract_strided_slice %232 {offsets = [0, 0], sizes = [2, 32], strides = [1, 1]} : vector<2x96xf32> to vector<2x32xf32>
    %235 = arith.addf %233, %234 : vector<2x32xf32>
    %236 = arith.negf %235 : vector<2x32xf32>
    %237 = math.exp %236 : vector<2x32xf32>
    %cst_37 = arith.constant 1.000000e+00 : f32
    %238 = vector.broadcast %cst_37 : f32 to vector<2x32xf32>
    %239 = arith.addf %238, %237 : vector<2x32xf32>
    %240 = arith.divf %238, %239 : vector<2x32xf32>
    %241 = vector.extract_strided_slice %231 {offsets = [0, 32], sizes = [2, 32], strides = [1, 1]} : vector<2x96xf32> to vector<2x32xf32>
    %242 = vector.extract_strided_slice %232 {offsets = [0, 32], sizes = [2, 32], strides = [1, 1]} : vector<2x96xf32> to vector<2x32xf32>
    %243 = arith.addf %241, %242 : vector<2x32xf32>
    %244 = arith.negf %243 : vector<2x32xf32>
    %245 = math.exp %244 : vector<2x32xf32>
    %cst_38 = arith.constant 1.000000e+00 : f32
    %246 = vector.broadcast %cst_38 : f32 to vector<2x32xf32>
    %247 = arith.addf %246, %245 : vector<2x32xf32>
    %248 = arith.divf %246, %247 : vector<2x32xf32>
    %249 = vector.extract_strided_slice %231 {offsets = [0, 64], sizes = [2, 32], strides = [1, 1]} : vector<2x96xf32> to vector<2x32xf32>
    %250 = vector.extract_strided_slice %232 {offsets = [0, 64], sizes = [2, 32], strides = [1, 1]} : vector<2x96xf32> to vector<2x32xf32>
    %251 = vector.broadcast %10 : vector<1x32xf32> to vector<2x32xf32>
    %252 = arith.addf %250, %251 : vector<2x32xf32>
    %253 = arith.mulf %240, %252 : vector<2x32xf32>
    %254 = arith.addf %249, %253 : vector<2x32xf32>
    %255 = math.tanh %254 : vector<2x32xf32>
    %cst_39 = arith.constant 1.000000e+00 : f32
    %256 = vector.broadcast %cst_39 : f32 to vector<2x32xf32>
    %257 = arith.subf %256, %248 : vector<2x32xf32>
    %258 = arith.mulf %257, %255 : vector<2x32xf32>
    %259 = arith.mulf %248, %198 : vector<2x32xf32>
    %260 = arith.addf %258, %259 : vector<2x32xf32>
    %261 = tpu.concatenate %230, %260 in 1 : vector<2x32xf32>, vector<2x32xf32> -> vector<2x64xf32>
    %cst_40 = arith.constant dense<0.000000e+00> : vector<2x192xf32>
    %262 = tpu.matmul %261, %8, %cst_40 {dimension_numbers = #tpu.dot_dimension_numbers<[1], [0], [0], [1], [0, 0, 1, 1], [], []>} : vector<2x64xf32>, vector<64x192xf32>, vector<2x192xf32> -> vector<2x192xf32>
    %263 = vector.extract_strided_slice %6 {offsets = [8, 0], sizes = [2, 96], strides = [1, 1]} : vector<16x96xf32> to vector<2x96xf32>
    %264 = vector.extract_strided_slice %262 {offsets = [0, 0], sizes = [2, 96], strides = [1, 1]} : vector<2x192xf32> to vector<2x96xf32>
    %265 = vector.extract_strided_slice %263 {offsets = [0, 0], sizes = [2, 32], strides = [1, 1]} : vector<2x96xf32> to vector<2x32xf32>
    %266 = vector.extract_strided_slice %264 {offsets = [0, 0], sizes = [2, 32], strides = [1, 1]} : vector<2x96xf32> to vector<2x32xf32>
    %267 = arith.addf %265, %266 : vector<2x32xf32>
    %268 = arith.negf %267 : vector<2x32xf32>
    %269 = math.exp %268 : vector<2x32xf32>
    %cst_41 = arith.constant 1.000000e+00 : f32
    %270 = vector.broadcast %cst_41 : f32 to vector<2x32xf32>
    %271 = arith.addf %270, %269 : vector<2x32xf32>
    %272 = arith.divf %270, %271 : vector<2x32xf32>
    %273 = vector.extract_strided_slice %263 {offsets = [0, 32], sizes = [2, 32], strides = [1, 1]} : vector<2x96xf32> to vector<2x32xf32>
    %274 = vector.extract_strided_slice %264 {offsets = [0, 32], sizes = [2, 32], strides = [1, 1]} : vector<2x96xf32> to vector<2x32xf32>
    %275 = arith.addf %273, %274 : vector<2x32xf32>
    %276 = arith.negf %275 : vector<2x32xf32>
    %277 = math.exp %276 : vector<2x32xf32>
    %cst_42 = arith.constant 1.000000e+00 : f32
    %278 = vector.broadcast %cst_42 : f32 to vector<2x32xf32>
    %279 = arith.addf %278, %277 : vector<2x32xf32>
    %280 = arith.divf %278, %279 : vector<2x32xf32>
    %281 = vector.extract_strided_slice %263 {offsets = [0, 64], sizes = [2, 32], strides = [1, 1]} : vector<2x96xf32> to vector<2x32xf32>
    %282 = vector.extract_strided_slice %264 {offsets = [0, 64], sizes = [2, 32], strides = [1, 1]} : vector<2x96xf32> to vector<2x32xf32>
    %283 = vector.broadcast %9 : vector<1x32xf32> to vector<2x32xf32>
    %284 = arith.addf %282, %283 : vector<2x32xf32>
    %285 = arith.mulf %272, %284 : vector<2x32xf32>
    %286 = arith.addf %281, %285 : vector<2x32xf32>
    %287 = math.tanh %286 : vector<2x32xf32>
    %cst_43 = arith.constant 1.000000e+00 : f32
    %288 = vector.broadcast %cst_43 : f32 to vector<2x32xf32>
    %289 = arith.subf %288, %280 : vector<2x32xf32>
    %290 = arith.mulf %289, %287 : vector<2x32xf32>
    %291 = arith.mulf %280, %230 : vector<2x32xf32>
    %292 = arith.addf %290, %291 : vector<2x32xf32>
    %293 = vector.extract_strided_slice %7 {offsets = [6, 0], sizes = [2, 96], strides = [1, 1]} : vector<16x96xf32> to vector<2x96xf32>
    %294 = vector.extract_strided_slice %262 {offsets = [0, 96], sizes = [2, 96], strides = [1, 1]} : vector<2x192xf32> to vector<2x96xf32>
    %295 = vector.extract_strided_slice %293 {offsets = [0, 0], sizes = [2, 32], strides = [1, 1]} : vector<2x96xf32> to vector<2x32xf32>
    %296 = vector.extract_strided_slice %294 {offsets = [0, 0], sizes = [2, 32], strides = [1, 1]} : vector<2x96xf32> to vector<2x32xf32>
    %297 = arith.addf %295, %296 : vector<2x32xf32>
    %298 = arith.negf %297 : vector<2x32xf32>
    %299 = math.exp %298 : vector<2x32xf32>
    %cst_44 = arith.constant 1.000000e+00 : f32
    %300 = vector.broadcast %cst_44 : f32 to vector<2x32xf32>
    %301 = arith.addf %300, %299 : vector<2x32xf32>
    %302 = arith.divf %300, %301 : vector<2x32xf32>
    %303 = vector.extract_strided_slice %293 {offsets = [0, 32], sizes = [2, 32], strides = [1, 1]} : vector<2x96xf32> to vector<2x32xf32>
    %304 = vector.extract_strided_slice %294 {offsets = [0, 32], sizes = [2, 32], strides = [1, 1]} : vector<2x96xf32> to vector<2x32xf32>
    %305 = arith.addf %303, %304 : vector<2x32xf32>
    %306 = arith.negf %305 : vector<2x32xf32>
    %307 = math.exp %306 : vector<2x32xf32>
    %cst_45 = arith.constant 1.000000e+00 : f32
    %308 = vector.broadcast %cst_45 : f32 to vector<2x32xf32>
    %309 = arith.addf %308, %307 : vector<2x32xf32>
    %310 = arith.divf %308, %309 : vector<2x32xf32>
    %311 = vector.extract_strided_slice %293 {offsets = [0, 64], sizes = [2, 32], strides = [1, 1]} : vector<2x96xf32> to vector<2x32xf32>
    %312 = vector.extract_strided_slice %294 {offsets = [0, 64], sizes = [2, 32], strides = [1, 1]} : vector<2x96xf32> to vector<2x32xf32>
    %313 = vector.broadcast %10 : vector<1x32xf32> to vector<2x32xf32>
    %314 = arith.addf %312, %313 : vector<2x32xf32>
    %315 = arith.mulf %302, %314 : vector<2x32xf32>
    %316 = arith.addf %311, %315 : vector<2x32xf32>
    %317 = math.tanh %316 : vector<2x32xf32>
    %cst_46 = arith.constant 1.000000e+00 : f32
    %318 = vector.broadcast %cst_46 : f32 to vector<2x32xf32>
    %319 = arith.subf %318, %310 : vector<2x32xf32>
    %320 = arith.mulf %319, %317 : vector<2x32xf32>
    %321 = arith.mulf %310, %260 : vector<2x32xf32>
    %322 = arith.addf %320, %321 : vector<2x32xf32>
    %323 = tpu.concatenate %292, %322 in 1 : vector<2x32xf32>, vector<2x32xf32> -> vector<2x64xf32>
    %cst_47 = arith.constant dense<0.000000e+00> : vector<2x192xf32>
    %324 = tpu.matmul %323, %8, %cst_47 {dimension_numbers = #tpu.dot_dimension_numbers<[1], [0], [0], [1], [0, 0, 1, 1], [], []>} : vector<2x64xf32>, vector<64x192xf32>, vector<2x192xf32> -> vector<2x192xf32>
    %325 = vector.extract_strided_slice %6 {offsets = [10, 0], sizes = [2, 96], strides = [1, 1]} : vector<16x96xf32> to vector<2x96xf32>
    %326 = vector.extract_strided_slice %324 {offsets = [0, 0], sizes = [2, 96], strides = [1, 1]} : vector<2x192xf32> to vector<2x96xf32>
    %327 = vector.extract_strided_slice %325 {offsets = [0, 0], sizes = [2, 32], strides = [1, 1]} : vector<2x96xf32> to vector<2x32xf32>
    %328 = vector.extract_strided_slice %326 {offsets = [0, 0], sizes = [2, 32], strides = [1, 1]} : vector<2x96xf32> to vector<2x32xf32>
    %329 = arith.addf %327, %328 : vector<2x32xf32>
    %330 = arith.negf %329 : vector<2x32xf32>
    %331 = math.exp %330 : vector<2x32xf32>
    %cst_48 = arith.constant 1.000000e+00 : f32
    %332 = vector.broadcast %cst_48 : f32 to vector<2x32xf32>
    %333 = arith.addf %332, %331 : vector<2x32xf32>
    %334 = arith.divf %332, %333 : vector<2x32xf32>
    %335 = vector.extract_strided_slice %325 {offsets = [0, 32], sizes = [2, 32], strides = [1, 1]} : vector<2x96xf32> to vector<2x32xf32>
    %336 = vector.extract_strided_slice %326 {offsets = [0, 32], sizes = [2, 32], strides = [1, 1]} : vector<2x96xf32> to vector<2x32xf32>
    %337 = arith.addf %335, %336 : vector<2x32xf32>
    %338 = arith.negf %337 : vector<2x32xf32>
    %339 = math.exp %338 : vector<2x32xf32>
    %cst_49 = arith.constant 1.000000e+00 : f32
    %340 = vector.broadcast %cst_49 : f32 to vector<2x32xf32>
    %341 = arith.addf %340, %339 : vector<2x32xf32>
    %342 = arith.divf %340, %341 : vector<2x32xf32>
    %343 = vector.extract_strided_slice %325 {offsets = [0, 64], sizes = [2, 32], strides = [1, 1]} : vector<2x96xf32> to vector<2x32xf32>
    %344 = vector.extract_strided_slice %326 {offsets = [0, 64], sizes = [2, 32], strides = [1, 1]} : vector<2x96xf32> to vector<2x32xf32>
    %345 = vector.broadcast %9 : vector<1x32xf32> to vector<2x32xf32>
    %346 = arith.addf %344, %345 : vector<2x32xf32>
    %347 = arith.mulf %334, %346 : vector<2x32xf32>
    %348 = arith.addf %343, %347 : vector<2x32xf32>
    %349 = math.tanh %348 : vector<2x32xf32>
    %cst_50 = arith.constant 1.000000e+00 : f32
    %350 = vector.broadcast %cst_50 : f32 to vector<2x32xf32>
    %351 = arith.subf %350, %342 : vector<2x32xf32>
    %352 = arith.mulf %351, %349 : vector<2x32xf32>
    %353 = arith.mulf %342, %292 : vector<2x32xf32>
    %354 = arith.addf %352, %353 : vector<2x32xf32>
    %355 = vector.extract_strided_slice %7 {offsets = [4, 0], sizes = [2, 96], strides = [1, 1]} : vector<16x96xf32> to vector<2x96xf32>
    %356 = vector.extract_strided_slice %324 {offsets = [0, 96], sizes = [2, 96], strides = [1, 1]} : vector<2x192xf32> to vector<2x96xf32>
    %357 = vector.extract_strided_slice %355 {offsets = [0, 0], sizes = [2, 32], strides = [1, 1]} : vector<2x96xf32> to vector<2x32xf32>
    %358 = vector.extract_strided_slice %356 {offsets = [0, 0], sizes = [2, 32], strides = [1, 1]} : vector<2x96xf32> to vector<2x32xf32>
    %359 = arith.addf %357, %358 : vector<2x32xf32>
    %360 = arith.negf %359 : vector<2x32xf32>
    %361 = math.exp %360 : vector<2x32xf32>
    %cst_51 = arith.constant 1.000000e+00 : f32
    %362 = vector.broadcast %cst_51 : f32 to vector<2x32xf32>
    %363 = arith.addf %362, %361 : vector<2x32xf32>
    %364 = arith.divf %362, %363 : vector<2x32xf32>
    %365 = vector.extract_strided_slice %355 {offsets = [0, 32], sizes = [2, 32], strides = [1, 1]} : vector<2x96xf32> to vector<2x32xf32>
    %366 = vector.extract_strided_slice %356 {offsets = [0, 32], sizes = [2, 32], strides = [1, 1]} : vector<2x96xf32> to vector<2x32xf32>
    %367 = arith.addf %365, %366 : vector<2x32xf32>
    %368 = arith.negf %367 : vector<2x32xf32>
    %369 = math.exp %368 : vector<2x32xf32>
    %cst_52 = arith.constant 1.000000e+00 : f32
    %370 = vector.broadcast %cst_52 : f32 to vector<2x32xf32>
    %371 = arith.addf %370, %369 : vector<2x32xf32>
    %372 = arith.divf %370, %371 : vector<2x32xf32>
    %373 = vector.extract_strided_slice %355 {offsets = [0, 64], sizes = [2, 32], strides = [1, 1]} : vector<2x96xf32> to vector<2x32xf32>
    %374 = vector.extract_strided_slice %356 {offsets = [0, 64], sizes = [2, 32], strides = [1, 1]} : vector<2x96xf32> to vector<2x32xf32>
    %375 = vector.broadcast %10 : vector<1x32xf32> to vector<2x32xf32>
    %376 = arith.addf %374, %375 : vector<2x32xf32>
    %377 = arith.mulf %364, %376 : vector<2x32xf32>
    %378 = arith.addf %373, %377 : vector<2x32xf32>
    %379 = math.tanh %378 : vector<2x32xf32>
    %cst_53 = arith.constant 1.000000e+00 : f32
    %380 = vector.broadcast %cst_53 : f32 to vector<2x32xf32>
    %381 = arith.subf %380, %372 : vector<2x32xf32>
    %382 = arith.mulf %381, %379 : vector<2x32xf32>
    %383 = arith.mulf %372, %322 : vector<2x32xf32>
    %384 = arith.addf %382, %383 : vector<2x32xf32>
    %385 = tpu.concatenate %354, %384 in 1 : vector<2x32xf32>, vector<2x32xf32> -> vector<2x64xf32>
    %cst_54 = arith.constant dense<0.000000e+00> : vector<2x192xf32>
    %386 = tpu.matmul %385, %8, %cst_54 {dimension_numbers = #tpu.dot_dimension_numbers<[1], [0], [0], [1], [0, 0, 1, 1], [], []>} : vector<2x64xf32>, vector<64x192xf32>, vector<2x192xf32> -> vector<2x192xf32>
    %387 = vector.extract_strided_slice %6 {offsets = [12, 0], sizes = [2, 96], strides = [1, 1]} : vector<16x96xf32> to vector<2x96xf32>
    %388 = vector.extract_strided_slice %386 {offsets = [0, 0], sizes = [2, 96], strides = [1, 1]} : vector<2x192xf32> to vector<2x96xf32>
    %389 = vector.extract_strided_slice %387 {offsets = [0, 0], sizes = [2, 32], strides = [1, 1]} : vector<2x96xf32> to vector<2x32xf32>
    %390 = vector.extract_strided_slice %388 {offsets = [0, 0], sizes = [2, 32], strides = [1, 1]} : vector<2x96xf32> to vector<2x32xf32>
    %391 = arith.addf %389, %390 : vector<2x32xf32>
    %392 = arith.negf %391 : vector<2x32xf32>
    %393 = math.exp %392 : vector<2x32xf32>
    %cst_55 = arith.constant 1.000000e+00 : f32
    %394 = vector.broadcast %cst_55 : f32 to vector<2x32xf32>
    %395 = arith.addf %394, %393 : vector<2x32xf32>
    %396 = arith.divf %394, %395 : vector<2x32xf32>
    %397 = vector.extract_strided_slice %387 {offsets = [0, 32], sizes = [2, 32], strides = [1, 1]} : vector<2x96xf32> to vector<2x32xf32>
    %398 = vector.extract_strided_slice %388 {offsets = [0, 32], sizes = [2, 32], strides = [1, 1]} : vector<2x96xf32> to vector<2x32xf32>
    %399 = arith.addf %397, %398 : vector<2x32xf32>
    %400 = arith.negf %399 : vector<2x32xf32>
    %401 = math.exp %400 : vector<2x32xf32>
    %cst_56 = arith.constant 1.000000e+00 : f32
    %402 = vector.broadcast %cst_56 : f32 to vector<2x32xf32>
    %403 = arith.addf %402, %401 : vector<2x32xf32>
    %404 = arith.divf %402, %403 : vector<2x32xf32>
    %405 = vector.extract_strided_slice %387 {offsets = [0, 64], sizes = [2, 32], strides = [1, 1]} : vector<2x96xf32> to vector<2x32xf32>
    %406 = vector.extract_strided_slice %388 {offsets = [0, 64], sizes = [2, 32], strides = [1, 1]} : vector<2x96xf32> to vector<2x32xf32>
    %407 = vector.broadcast %9 : vector<1x32xf32> to vector<2x32xf32>
    %408 = arith.addf %406, %407 : vector<2x32xf32>
    %409 = arith.mulf %396, %408 : vector<2x32xf32>
    %410 = arith.addf %405, %409 : vector<2x32xf32>
    %411 = math.tanh %410 : vector<2x32xf32>
    %cst_57 = arith.constant 1.000000e+00 : f32
    %412 = vector.broadcast %cst_57 : f32 to vector<2x32xf32>
    %413 = arith.subf %412, %404 : vector<2x32xf32>
    %414 = arith.mulf %413, %411 : vector<2x32xf32>
    %415 = arith.mulf %404, %354 : vector<2x32xf32>
    %416 = arith.addf %414, %415 : vector<2x32xf32>
    %417 = vector.extract_strided_slice %7 {offsets = [2, 0], sizes = [2, 96], strides = [1, 1]} : vector<16x96xf32> to vector<2x96xf32>
    %418 = vector.extract_strided_slice %386 {offsets = [0, 96], sizes = [2, 96], strides = [1, 1]} : vector<2x192xf32> to vector<2x96xf32>
    %419 = vector.extract_strided_slice %417 {offsets = [0, 0], sizes = [2, 32], strides = [1, 1]} : vector<2x96xf32> to vector<2x32xf32>
    %420 = vector.extract_strided_slice %418 {offsets = [0, 0], sizes = [2, 32], strides = [1, 1]} : vector<2x96xf32> to vector<2x32xf32>
    %421 = arith.addf %419, %420 : vector<2x32xf32>
    %422 = arith.negf %421 : vector<2x32xf32>
    %423 = math.exp %422 : vector<2x32xf32>
    %cst_58 = arith.constant 1.000000e+00 : f32
    %424 = vector.broadcast %cst_58 : f32 to vector<2x32xf32>
    %425 = arith.addf %424, %423 : vector<2x32xf32>
    %426 = arith.divf %424, %425 : vector<2x32xf32>
    %427 = vector.extract_strided_slice %417 {offsets = [0, 32], sizes = [2, 32], strides = [1, 1]} : vector<2x96xf32> to vector<2x32xf32>
    %428 = vector.extract_strided_slice %418 {offsets = [0, 32], sizes = [2, 32], strides = [1, 1]} : vector<2x96xf32> to vector<2x32xf32>
    %429 = arith.addf %427, %428 : vector<2x32xf32>
    %430 = arith.negf %429 : vector<2x32xf32>
    %431 = math.exp %430 : vector<2x32xf32>
    %cst_59 = arith.constant 1.000000e+00 : f32
    %432 = vector.broadcast %cst_59 : f32 to vector<2x32xf32>
    %433 = arith.addf %432, %431 : vector<2x32xf32>
    %434 = arith.divf %432, %433 : vector<2x32xf32>
    %435 = vector.extract_strided_slice %417 {offsets = [0, 64], sizes = [2, 32], strides = [1, 1]} : vector<2x96xf32> to vector<2x32xf32>
    %436 = vector.extract_strided_slice %418 {offsets = [0, 64], sizes = [2, 32], strides = [1, 1]} : vector<2x96xf32> to vector<2x32xf32>
    %437 = vector.broadcast %10 : vector<1x32xf32> to vector<2x32xf32>
    %438 = arith.addf %436, %437 : vector<2x32xf32>
    %439 = arith.mulf %426, %438 : vector<2x32xf32>
    %440 = arith.addf %435, %439 : vector<2x32xf32>
    %441 = math.tanh %440 : vector<2x32xf32>
    %cst_60 = arith.constant 1.000000e+00 : f32
    %442 = vector.broadcast %cst_60 : f32 to vector<2x32xf32>
    %443 = arith.subf %442, %434 : vector<2x32xf32>
    %444 = arith.mulf %443, %441 : vector<2x32xf32>
    %445 = arith.mulf %434, %384 : vector<2x32xf32>
    %446 = arith.addf %444, %445 : vector<2x32xf32>
    %447 = tpu.concatenate %416, %446 in 1 : vector<2x32xf32>, vector<2x32xf32> -> vector<2x64xf32>
    %cst_61 = arith.constant dense<0.000000e+00> : vector<2x192xf32>
    %448 = tpu.matmul %447, %8, %cst_61 {dimension_numbers = #tpu.dot_dimension_numbers<[1], [0], [0], [1], [0, 0, 1, 1], [], []>} : vector<2x64xf32>, vector<64x192xf32>, vector<2x192xf32> -> vector<2x192xf32>
    %449 = vector.extract_strided_slice %6 {offsets = [14, 0], sizes = [2, 96], strides = [1, 1]} : vector<16x96xf32> to vector<2x96xf32>
    %450 = vector.extract_strided_slice %448 {offsets = [0, 0], sizes = [2, 96], strides = [1, 1]} : vector<2x192xf32> to vector<2x96xf32>
    %451 = vector.extract_strided_slice %449 {offsets = [0, 0], sizes = [2, 32], strides = [1, 1]} : vector<2x96xf32> to vector<2x32xf32>
    %452 = vector.extract_strided_slice %450 {offsets = [0, 0], sizes = [2, 32], strides = [1, 1]} : vector<2x96xf32> to vector<2x32xf32>
    %453 = arith.addf %451, %452 : vector<2x32xf32>
    %454 = arith.negf %453 : vector<2x32xf32>
    %455 = math.exp %454 : vector<2x32xf32>
    %cst_62 = arith.constant 1.000000e+00 : f32
    %456 = vector.broadcast %cst_62 : f32 to vector<2x32xf32>
    %457 = arith.addf %456, %455 : vector<2x32xf32>
    %458 = arith.divf %456, %457 : vector<2x32xf32>
    %459 = vector.extract_strided_slice %449 {offsets = [0, 32], sizes = [2, 32], strides = [1, 1]} : vector<2x96xf32> to vector<2x32xf32>
    %460 = vector.extract_strided_slice %450 {offsets = [0, 32], sizes = [2, 32], strides = [1, 1]} : vector<2x96xf32> to vector<2x32xf32>
    %461 = arith.addf %459, %460 : vector<2x32xf32>
    %462 = arith.negf %461 : vector<2x32xf32>
    %463 = math.exp %462 : vector<2x32xf32>
    %cst_63 = arith.constant 1.000000e+00 : f32
    %464 = vector.broadcast %cst_63 : f32 to vector<2x32xf32>
    %465 = arith.addf %464, %463 : vector<2x32xf32>
    %466 = arith.divf %464, %465 : vector<2x32xf32>
    %467 = vector.extract_strided_slice %449 {offsets = [0, 64], sizes = [2, 32], strides = [1, 1]} : vector<2x96xf32> to vector<2x32xf32>
    %468 = vector.extract_strided_slice %450 {offsets = [0, 64], sizes = [2, 32], strides = [1, 1]} : vector<2x96xf32> to vector<2x32xf32>
    %469 = vector.broadcast %9 : vector<1x32xf32> to vector<2x32xf32>
    %470 = arith.addf %468, %469 : vector<2x32xf32>
    %471 = arith.mulf %458, %470 : vector<2x32xf32>
    %472 = arith.addf %467, %471 : vector<2x32xf32>
    %473 = math.tanh %472 : vector<2x32xf32>
    %cst_64 = arith.constant 1.000000e+00 : f32
    %474 = vector.broadcast %cst_64 : f32 to vector<2x32xf32>
    %475 = arith.subf %474, %466 : vector<2x32xf32>
    %476 = arith.mulf %475, %473 : vector<2x32xf32>
    %477 = arith.mulf %466, %416 : vector<2x32xf32>
    %478 = arith.addf %476, %477 : vector<2x32xf32>
    %479 = vector.extract_strided_slice %7 {offsets = [0, 0], sizes = [2, 96], strides = [1, 1]} : vector<16x96xf32> to vector<2x96xf32>
    %480 = vector.extract_strided_slice %448 {offsets = [0, 96], sizes = [2, 96], strides = [1, 1]} : vector<2x192xf32> to vector<2x96xf32>
    %481 = vector.extract_strided_slice %479 {offsets = [0, 0], sizes = [2, 32], strides = [1, 1]} : vector<2x96xf32> to vector<2x32xf32>
    %482 = vector.extract_strided_slice %480 {offsets = [0, 0], sizes = [2, 32], strides = [1, 1]} : vector<2x96xf32> to vector<2x32xf32>
    %483 = arith.addf %481, %482 : vector<2x32xf32>
    %484 = arith.negf %483 : vector<2x32xf32>
    %485 = math.exp %484 : vector<2x32xf32>
    %cst_65 = arith.constant 1.000000e+00 : f32
    %486 = vector.broadcast %cst_65 : f32 to vector<2x32xf32>
    %487 = arith.addf %486, %485 : vector<2x32xf32>
    %488 = arith.divf %486, %487 : vector<2x32xf32>
    %489 = vector.extract_strided_slice %479 {offsets = [0, 32], sizes = [2, 32], strides = [1, 1]} : vector<2x96xf32> to vector<2x32xf32>
    %490 = vector.extract_strided_slice %480 {offsets = [0, 32], sizes = [2, 32], strides = [1, 1]} : vector<2x96xf32> to vector<2x32xf32>
    %491 = arith.addf %489, %490 : vector<2x32xf32>
    %492 = arith.negf %491 : vector<2x32xf32>
    %493 = math.exp %492 : vector<2x32xf32>
    %cst_66 = arith.constant 1.000000e+00 : f32
    %494 = vector.broadcast %cst_66 : f32 to vector<2x32xf32>
    %495 = arith.addf %494, %493 : vector<2x32xf32>
    %496 = arith.divf %494, %495 : vector<2x32xf32>
    %497 = vector.extract_strided_slice %479 {offsets = [0, 64], sizes = [2, 32], strides = [1, 1]} : vector<2x96xf32> to vector<2x32xf32>
    %498 = vector.extract_strided_slice %480 {offsets = [0, 64], sizes = [2, 32], strides = [1, 1]} : vector<2x96xf32> to vector<2x32xf32>
    %499 = vector.broadcast %10 : vector<1x32xf32> to vector<2x32xf32>
    %500 = arith.addf %498, %499 : vector<2x32xf32>
    %501 = arith.mulf %488, %500 : vector<2x32xf32>
    %502 = arith.addf %497, %501 : vector<2x32xf32>
    %503 = math.tanh %502 : vector<2x32xf32>
    %cst_67 = arith.constant 1.000000e+00 : f32
    %504 = vector.broadcast %cst_67 : f32 to vector<2x32xf32>
    %505 = arith.subf %504, %496 : vector<2x32xf32>
    %506 = arith.mulf %505, %503 : vector<2x32xf32>
    %507 = arith.mulf %496, %446 : vector<2x32xf32>
    %508 = arith.addf %506, %507 : vector<2x32xf32>
    %509 = tpu.concatenate %44, %508 in 1 : vector<2x32xf32>, vector<2x32xf32> -> vector<2x64xf32>
    %510 = tpu.concatenate %106, %446 in 1 : vector<2x32xf32>, vector<2x32xf32> -> vector<2x64xf32>
    %511 = tpu.concatenate %168, %384 in 1 : vector<2x32xf32>, vector<2x32xf32> -> vector<2x64xf32>
    %512 = tpu.concatenate %230, %322 in 1 : vector<2x32xf32>, vector<2x32xf32> -> vector<2x64xf32>
    %513 = tpu.concatenate %292, %260 in 1 : vector<2x32xf32>, vector<2x32xf32> -> vector<2x64xf32>
    %514 = tpu.concatenate %354, %198 in 1 : vector<2x32xf32>, vector<2x32xf32> -> vector<2x64xf32>
    %515 = tpu.concatenate %416, %136 in 1 : vector<2x32xf32>, vector<2x32xf32> -> vector<2x64xf32>
    %516 = tpu.concatenate %478, %74 in 1 : vector<2x32xf32>, vector<2x32xf32> -> vector<2x64xf32>
    %517 = vector.shape_cast %509 : vector<2x64xf32> to vector<2x1x64xf32>
    %518 = vector.shape_cast %510 : vector<2x64xf32> to vector<2x1x64xf32>
    %519 = vector.shape_cast %511 : vector<2x64xf32> to vector<2x1x64xf32>
    %520 = vector.shape_cast %512 : vector<2x64xf32> to vector<2x1x64xf32>
    %521 = vector.shape_cast %513 : vector<2x64xf32> to vector<2x1x64xf32>
    %522 = vector.shape_cast %514 : vector<2x64xf32> to vector<2x1x64xf32>
    %523 = vector.shape_cast %515 : vector<2x64xf32> to vector<2x1x64xf32>
    %524 = vector.shape_cast %516 : vector<2x64xf32> to vector<2x1x64xf32>
    %525 = tpu.concatenate %517, %518, %519, %520, %521, %522, %523, %524 in 1 : vector<2x1x64xf32>, vector<2x1x64xf32>, vector<2x1x64xf32>, vector<2x1x64xf32>, vector<2x1x64xf32>, vector<2x1x64xf32>, vector<2x1x64xf32>, vector<2x1x64xf32> -> vector<2x8x64xf32>
    %c0_68 = arith.constant 0 : index
    %c0_69 = arith.constant 0 : index
    %c0_70 = arith.constant 0 : index
    %526 = vector.load %arg7[%c0_68, %c0_69, %c0_70] : memref<2x8x64xf32, #tpu.memory_space<vmem>>, vector<2x8x64xf32>
    tpu.vector_store %arg7[%c0_68, %c0_69, %c0_70], %525 {strides = array<i32>} : memref<2x8x64xf32, #tpu.memory_space<vmem>>, vector<2x8x64xf32>,
    %527 = tpu.concatenate %478, %508 in 1 : vector<2x32xf32>, vector<2x32xf32> -> vector<2x64xf32>
    %c0_71 = arith.constant 0 : index
    %c0_72 = arith.constant 0 : index
    %528 = vector.load %arg5[%c0_71, %c0_72] : memref<64x32xf32, #tpu.memory_space<vmem>>, vector<64x32xf32>
    %cst_73 = arith.constant dense<0.000000e+00> : vector<2x32xf32>
    %529 = tpu.matmul %527, %528, %cst_73 {dimension_numbers = #tpu.dot_dimension_numbers<[1], [0], [0], [1], [0, 0, 1, 1], [], []>} : vector<2x64xf32>, vector<64x32xf32>, vector<2x32xf32> -> vector<2x32xf32>
    %c0_74 = arith.constant 0 : index
    %c0_75 = arith.constant 0 : index
    %530 = vector.load %arg6[%c0_74, %c0_75] : memref<1x32xf32, #tpu.memory_space<vmem>>, vector<1x32xf32>
    %531 = vector.broadcast %530 : vector<1x32xf32> to vector<2x32xf32>
    %532 = arith.addf %529, %531 : vector<2x32xf32>
    %533 = math.tanh %532 : vector<2x32xf32>
    %c0_76 = arith.constant 0 : index
    %c0_77 = arith.constant 0 : index
    %534 = vector.load %arg8[%c0_76, %c0_77] : memref<2x32xf32, #tpu.memory_space<vmem>>, vector<2x32xf32>
    tpu.vector_store %arg8[%c0_76, %c0_77], %533 {strides = array<i32>} : memref<2x32xf32, #tpu.memory_space<vmem>>, vector<2x32xf32>,
    return
  }
}

</mosaic_0001>

<llo_original>
// kernel: encoder_forward.1
$region0: #{encoder_forward.1}
  #allocation0 [shape = 'u32[]', space=smem, size = 0x4, offset = 0x4, fixed_abs, tag = 'smem constant byte address 0x4 - core index']
  #allocation1 [shape = 'u32[72,128]{1,0:T(1,128)}', space=vmem, size = 0x9000, scoped, tag = 'internal scratch']
  %s0 = inlined_call_operand.vmem [shape: f32[16,32], index: 0, kind: input, shape index: {}]
  %s1 = inlined_call_operand.vmem [shape: f32[32,192], index: 1, kind: input, shape index: {}]
  %s2 = inlined_call_operand.vmem [shape: f32[1,192], index: 2, kind: input, shape index: {}]
  %s3 = inlined_call_operand.vmem [shape: f32[64,192], index: 3, kind: input, shape index: {}]
  %s4 = inlined_call_operand.vmem [shape: f32[1,64], index: 4, kind: input, shape index: {}]
  %s5 = inlined_call_operand.vmem [shape: f32[64,32], index: 5, kind: input, shape index: {}]
  %s6 = inlined_call_operand.vmem [shape: f32[1,32], index: 6, kind: input, shape index: {}]
  %s7 = inlined_call_operand.hbm [shape: f32[2,8,64], index: 7, kind: output, shape index: {0}]
  %s8 = inlined_call_operand.hbm [shape: f32[2,32], index: 8, kind: output, shape index: {1}]
  %9 = xla_tuple %s7, %s8
  %s10 = sld [smem:[#allocation0]]
  $region46: #{encoder_forward.1} parent=0
    _
  %s12 = ssub.s32 1, %s10
  %s13 = scalar_select 0, %s12, %s10
  $region1: #{encoder_forward.1} parent=0
    #allocation2 [shape = 'u8[8192]{0}', space=vmem, size = 0x2000, scoped, tag = 'output window, operand 0, single buffered']
    #allocation3 [shape = 's32[1]{0}', space=sflag, size = 0x4, scoped, tag = 'scoped memory for encoder_forward.1']
    #allocation4 [shape = 'u8[1024]{0}', space=vmem, size = 0x400, scoped, tag = 'output window, operand 1, single buffered']
    #allocation5 [shape = 's32[1]{0}', space=sflag, size = 0x4, scoped, tag = 'scoped memory for encoder_forward.1']
    %14 = vsyncpa [#allocation3], 0
    %15 = vsyncpa [#allocation5], 0
    // Predicated region
    $region2: #{encoder_forward.1} parent=1 // pred_check
      _
    $region3: #{encoder_forward.1} parent=1 // pred_check_branch
      %17 = sbr.rel (0) target = $region5
    $region4: #{encoder_forward.1} parent=1 // pred_region
      _
    $region5: #{encoder_forward.1} parent=1 // pred_fallthru
      _
    // Predicated region
    $region6: #{encoder_forward.1} parent=1 // pred_check
      _
    $region7: #{encoder_forward.1} parent=1 // pred_check_branch
      %19 = sbr.rel (0) target = $region9
    $region8: #{encoder_forward.1} parent=1 // pred_region
      _
    $region9: #{encoder_forward.1} parent=1 // pred_fallthru
      _
    // Predicated region
    $region10: #{encoder_forward.1} parent=1 // pred_check
      _
    $region11: #{encoder_forward.1} parent=1 // pred_check_branch
      %21 = sbr.rel (0) target = $region13
    $region12: #{encoder_forward.1} parent=1 // pred_region
      _
    $region13: #{encoder_forward.1} parent=1 // pred_fallthru
      _
    // Predicated region
    $region14: #{encoder_forward.1} parent=1 // pred_check
      _
    $region15: #{encoder_forward.1} parent=1 // pred_check_branch
      %23 = sbr.rel (0) target = $region17
    $region16: #{encoder_forward.1} parent=1 // pred_region
      _
    $region17: #{encoder_forward.1} parent=1 // pred_fallthru
      _
    // Predicated region
    $region18: #{encoder_forward.1} parent=1 // pred_check
      _
    $region19: #{encoder_forward.1} parent=1 // pred_check_branch
      %25 = sbr.rel (0) target = $region21
    $region20: #{encoder_forward.1} parent=1 // pred_region
      _
    $region21: #{encoder_forward.1} parent=1 // pred_fallthru
      _
    // Predicated region
    $region22: #{encoder_forward.1} parent=1 // pred_check
      _
    $region23: #{encoder_forward.1} parent=1 // pred_check_branch
      %27 = sbr.rel (0) target = $region25
    $region24: #{encoder_forward.1} parent=1 // pred_region
      _
    $region25: #{encoder_forward.1} parent=1 // pred_fallthru
      _
    // Predicated region
    $region26: #{encoder_forward.1} parent=1 // pred_check
      _
    $region27: #{encoder_forward.1} parent=1 // pred_check_branch
      %29 = sbr.rel (0) target = $region29
    $region28: #{encoder_forward.1} parent=1 // pred_region
      _
    $region29: #{encoder_forward.1} parent=1 // pred_fallthru
      _
    %v30 = vld [vmem:[%s0] sm:$0xff]
    %v31 = vld [vmem:[%s0 + $0x8] sm:$0xff]
    %v32 = vld [vmem:[%s1] sm:$0xff]
    %v33 = vld [vmem:[%s1 + $0x8] sm:$0xff]
    %v34 = vld [vmem:[%s1 + $0x10] sm:$0xff]
    %v35 = vld [vmem:[%s1 + $0x18] sm:$0xff]
    %v36 = vld [vmem:[%s1 + $0x20] sm:$0xff]
    %v37 = vld [vmem:[%s1 + $0x28] sm:$0xff]
    %v38 = vld [vmem:[%s1 + $0x30] sm:$0xff]
    %v39 = vld [vmem:[%s1 + $0x38] sm:$0xff]
    %v40 = vld [vmem:[%s2] sm:$0x3]
    %v42 = vperm.slane %v40, 0
    %v43 = vperm.slane %v40, 1
    %vm46 = vcmask 261120
    %v48 = vsel %vm46, %v30, 0
    %v51 = vsel %vm46, %v31, 0
    %53 = vmatpush.msra.mxu0 0.0
    %54 = vmatpush.msra.mxu0 0.0
    %55 = vmatpush.msra.mxu0 0.0
    %56 = vmatpush.msra.mxu0 0.0
    %57 = vmatpush.msra.mxu0 0.0
    %58 = vmatpush.msra.mxu0 0.0
    %59 = vmatpush.msra.mxu0 0.0
    %60 = vmatpush.msra.mxu0 0.0
    %61 = vmatpush.msra.mxu0 0.0
    %62 = vmatpush.msra.mxu0 0.0
    %63 = vmatpush.msra.mxu0 0.0
    %64 = vmatpush.msra.mxu0 0.0
    %65 = vmatpush.msra.mxu0 %v38
    %66 = vmatpush.msra.mxu0 %v36
    %67 = vmatpush.msra.mxu0 %v34
    %68 = vmatpush.msra.mxu0 %v32
    %69 = vmatmul.f32.gmra.mxu0 %v48
    %v70 = vpop.f32.mrf.mxu0
    %v71 = vadd.f32 %v42, %v70
    %72 = vmatmul.f32.gmra.mxu0 %v51
    %v73 = vpop.f32.mrf.mxu0
    %v74 = vadd.f32 %v42, %v73
    %75 = vdwg.mxu0
    %76 = vmatpush.msra.mxu0 0.0
    %77 = vmatpush.msra.mxu0 0.0
    %78 = vmatpush.msra.mxu0 0.0
    %79 = vmatpush.msra.mxu0 0.0
    %80 = vmatpush.msra.mxu0 0.0
    %81 = vmatpush.msra.mxu0 0.0
    %82 = vmatpush.msra.mxu0 0.0
    %83 = vmatpush.msra.mxu0 0.0
    %84 = vmatpush.msra.mxu0 0.0
    %85 = vmatpush.msra.mxu0 0.0
    %86 = vmatpush.msra.mxu0 0.0
    %87 = vmatpush.msra.mxu0 0.0
    %88 = vmatpush.msra.mxu0 %v39
    %89 = vmatpush.msra.mxu0 %v37
    %90 = vmatpush.msra.mxu0 %v35
    %91 = vmatpush.msra.mxu0 %v33
    %92 = vmatmul.f32.gmra.mxu0 %v48
    %v93 = vpop.f32.mrf.mxu0
    %v94 = vadd.f32 %v43, %v93
    %95 = vmatmul.f32.gmra.mxu0 %v51
    %v96 = vpop.f32.mrf.mxu0
    %v97 = vadd.f32 %v43, %v96
    %98 = vdwg.mxu0
    %v99 = vld [vmem:[%s3] sm:$0xff]
    %v100 = vld [vmem:[%s3 + $0x8] sm:$0xff]
    %v101 = vld [vmem:[%s3 + $0x10] sm:$0xff]
    %v102 = vld [vmem:[%s3 + $0x18] sm:$0xff]
    %v103 = vld [vmem:[%s3 + $0x20] sm:$0xff]
    %v104 = vld [vmem:[%s3 + $0x28] sm:$0xff]
    %v105 = vld [vmem:[%s3 + $0x30] sm:$0xff]
    %v106 = vld [vmem:[%s3 + $0x38] sm:$0xff]
    %v107 = vld [vmem:[%s3 + $0x40] sm:$0xff]
    %v108 = vld [vmem:[%s3 + $0x48] sm:$0xff]
    %v109 = vld [vmem:[%s3 + $0x50] sm:$0xff]
    %v110 = vld [vmem:[%s3 + $0x58] sm:$0xff]
    %v111 = vld [vmem:[%s3 + $0x60] sm:$0xff]
    %v112 = vld [vmem:[%s3 + $0x68] sm:$0xff]
    %v113 = vld [vmem:[%s3 + $0x70] sm:$0xff]
    %v114 = vld [vmem:[%s3 + $0x78] sm:$0xff]
    %v115 = vld [vmem:[%s4] sm:$0x1]
    %vm116 = vcmask 523264
    %v118 = vsel %vm116, 0.0, 0
    %120 = vmatpush.msra.mxu0 0.0
    %121 = vmatpush.msra.mxu0 0.0
    %122 = vmatpush.msra.mxu0 0.0
    %123 = vmatpush.msra.mxu0 0.0
    %124 = vmatpush.msra.mxu0 0.0
    %125 = vmatpush.msra.mxu0 0.0
    %126 = vmatpush.msra.mxu0 0.0
    %127 = vmatpush.msra.mxu0 0.0
    %128 = vmatpush.msra.mxu0 %v113
    %129 = vmatpush.msra.mxu0 %v111
    %130 = vmatpush.msra.mxu0 %v109
    %131 = vmatpush.msra.mxu0 %v107
    %132 = vmatpush.msra.mxu0 %v105
    %133 = vmatpush.msra.mxu0 %v103
    %134 = vmatpush.msra.mxu0 %v101
    %135 = vmatpush.msra.mxu0 %v99
    %136 = vmatmul.f32.gmra.mxu0 %v118
    %v137 = vpop.f32.mrf.mxu0
    %v138 = vadd.f32 0.0, %v137
    %139 = vdwg.mxu0
    %140 = vmatpush.msra.mxu0 0.0
    %141 = vmatpush.msra.mxu0 0.0
    %142 = vmatpush.msra.mxu0 0.0
    %143 = vmatpush.msra.mxu0 0.0
    %144 = vmatpush.msra.mxu0 0.0
    %145 = vmatpush.msra.mxu0 0.0
    %146 = vmatpush.msra.mxu0 0.0
    %147 = vmatpush.msra.mxu0 0.0
    %148 = vmatpush.msra.mxu0 %v114
    %149 = vmatpush.msra.mxu0 %v112
    %150 = vmatpush.msra.mxu0 %v110
    %151 = vmatpush.msra.mxu0 %v108
    %152 = vmatpush.msra.mxu0 %v106
    %153 = vmatpush.msra.mxu0 %v104
    %154 = vmatpush.msra.mxu0 %v102
    %155 = vmatpush.msra.mxu0 %v100
    %156 = vmatmul.f32.gmra.mxu0 %v118
    %v157 = vpop.f32.mrf.mxu0
    %v158 = vadd.f32 0.0, %v157
    %159 = vdwg.mxu0
    %v160 = vadd.f32 %v71, %v138
    %v161 = vxor.u32 %v160, 2147483648
    %v162 = vmul.f32 %v161, 1.442695
    %v163 = vpow.pop %v162
    %v164 = vadd.f32 %v163, 1.0
    %v165 = vrcp.pop %v164
    %v166 = vmul.f32 %v164, %v165
    %v167 = vsub.f32 1.0, %v166
    %v168 = vmul.f32 %v165, %v167
    %v169 = vadd.f32 %v165, %v168
    %vm170 = vweird.f32 %v164
    %vm171 = vweird.f32 %v165
    %vm172 = vmor %vm170, %vm171
    %v173 = vsel %vm172, %v165, %v169
    %v174 = vand.u32 2147483647, %v164
    %vm175 = vcmp.eq.f32.partialorder %v174, 8.507059e+37
    %v176 = vand.u32 %v164, 2147483648
    %v177 = vor.u32 1.1754944e-38, %v176
    %v178 = vsel %vm175, %v177, %v173
    %v179 = vmul.f32 1.0, %v178
    %v181 = vperm.slane %v115, 0
    %182 = vrot.lane.b32.xlu0 %v181, 64
    %v183 = vpop.permute.xlu0 %182
    %v185 = vadd.f32 %v138, %v183
    %187 = vrot.lane.b32.xlu0 %v185, 64
    %v188 = vpop.permute.xlu0 %187
    %v190 = vmul.f32 %v179, %v188
    %192 = vrot.lane.b32.xlu0 %v190, 64
    %v193 = vpop.permute.xlu0 %192
    %v195 = vadd.f32 %v71, %v193
    %v196 = vtanh.pop %v195
    %v197 = vsub.f32 1.0, %v179
    %199 = vrot.lane.b32.xlu0 %v196, 96
    %v200 = vpop.permute.xlu0 %199
    %v202 = vmul.f32 %v197, %v200
    %v203 = vmul.f32 %v179, 0.0
    %v204 = vadd.f32 %v202, %v203
    %v206 = vrot.slane %v138, 2
    %v208 = vadd.f32 %v74, %v206
    %v209 = vxor.u32 %v208, 2147483648
    %v210 = vmul.f32 %v209, 1.442695
    %v211 = vpow.pop %v210
    %v212 = vadd.f32 %v211, 1.0
    %v213 = vrcp.pop %v212
    %v214 = vmul.f32 %v212, %v213
    %v215 = vsub.f32 1.0, %v214
    %v216 = vmul.f32 %v213, %v215
    %v217 = vadd.f32 %v213, %v216
    %vm218 = vweird.f32 %v212
    %vm219 = vweird.f32 %v213
    %vm220 = vmor %vm218, %vm219
    %v221 = vsel %vm220, %v213, %v217
    %v222 = vand.u32 2147483647, %v212
    %vm223 = vcmp.eq.f32.partialorder %v222, 8.507059e+37
    %v224 = vand.u32 %v212, 2147483648
    %v225 = vor.u32 1.1754944e-38, %v224
    %v226 = vsel %vm223, %v225, %v221
    %v227 = vmul.f32 1.0, %v226
    %v229 = vrot.slane %v158, 2
    %v231 = vadd.f32 %v97, %v229
    %v232 = vxor.u32 %v231, 2147483648
    %v233 = vmul.f32 %v232, 1.442695
    %v234 = vpow.pop %v233
    %v235 = vadd.f32 %v234, 1.0
    %v236 = vrcp.pop %v235
    %v237 = vmul.f32 %v235, %v236
    %v238 = vsub.f32 1.0, %v237
    %v239 = vmul.f32 %v236, %v238
    %v240 = vadd.f32 %v236, %v239
    %vm241 = vweird.f32 %v235
    %vm242 = vweird.f32 %v236
    %vm243 = vmor %vm241, %vm242
    %v244 = vsel %vm243, %v236, %v240
    %v245 = vand.u32 2147483647, %v235
    %vm246 = vcmp.eq.f32.partialorder %v245, 8.507059e+37
    %v247 = vand.u32 %v235, 2147483648
    %v248 = vor.u32 1.1754944e-38, %v247
    %v249 = vsel %vm246, %v248, %v244
    %v250 = vmul.f32 1.0, %v249
    %v252 = vadd.f32 %v158, %v181
    %v254 = vrot.slane %v252, 2
    %255 = vrot.lane.b32.xlu0 %v254, 64
    %v256 = vpop.permute.xlu0 %255
    %v258 = vmul.f32 %v227, %v256
    %260 = vrot.lane.b32.xlu0 %v258, 64
    %v261 = vpop.permute.xlu0 %260
    %v263 = vadd.f32 %v97, %v261
    %v264 = vtanh.pop %v263
    %v265 = vsub.f32 1.0, %v250
    %267 = vrot.lane.b32.xlu0 %v264, 96
    %v268 = vpop.permute.xlu0 %267
    %v270 = vmul.f32 %v265, %v268
    %v271 = vmul.f32 %v250, 0.0
    %v272 = vadd.f32 %v270, %v271
    %274 = vrot.lane.b32.xlu0 %v204, 96
    %v275 = vpop.permute.xlu0 %274
    %v278 = vrot.slane %v272, 6
    %279 = vrot.lane.b32.xlu0 %v278, 32
    %v280 = vpop.permute.xlu0 %279
    %v282 = vsel %vm46, %v275, %v280
    %v284 = vsel %vm116, %v282, 0
    %286 = vmatpush.msra.mxu0 0.0
    %287 = vmatpush.msra.mxu0 0.0
    %288 = vmatpush.msra.mxu0 0.0
    %289 = vmatpush.msra.mxu0 0.0
    %290 = vmatpush.msra.mxu0 0.0
    %291 = vmatpush.msra.mxu0 0.0
    %292 = vmatpush.msra.mxu0 0.0
    %293 = vmatpush.msra.mxu0 0.0
    %294 = vmatpush.msra.mxu0 %v113
    %295 = vmatpush.msra.mxu0 %v111
    %296 = vmatpush.msra.mxu0 %v109
    %297 = vmatpush.msra.mxu0 %v107
    %298 = vmatpush.msra.mxu0 %v105
    %299 = vmatpush.msra.mxu0 %v103
    %300 = vmatpush.msra.mxu0 %v101
    %301 = vmatpush.msra.mxu0 %v99
    %302 = vmatmul.f32.gmra.mxu0 %v284
    %v303 = vpop.f32.mrf.mxu0
    %v304 = vadd.f32 0.0, %v303
    %305 = vdwg.mxu0
    %306 = vmatpush.msra.mxu0 0.0
    %307 = vmatpush.msra.mxu0 0.0
    %308 = vmatpush.msra.mxu0 0.0
    %309 = vmatpush.msra.mxu0 0.0
    %310 = vmatpush.msra.mxu0 0.0
    %311 = vmatpush.msra.mxu0 0.0
    %312 = vmatpush.msra.mxu0 0.0
    %313 = vmatpush.msra.mxu0 0.0
    %314 = vmatpush.msra.mxu0 %v114
    %315 = vmatpush.msra.mxu0 %v112
    %316 = vmatpush.msra.mxu0 %v110
    %317 = vmatpush.msra.mxu0 %v108
    %318 = vmatpush.msra.mxu0 %v106
    %319 = vmatpush.msra.mxu0 %v104
    %320 = vmatpush.msra.mxu0 %v102
    %321 = vmatpush.msra.mxu0 %v100
    %322 = vmatmul.f32.gmra.mxu0 %v284
    %v323 = vpop.f32.mrf.mxu0
    %v324 = vadd.f32 0.0, %v323
    %325 = vdwg.mxu0
    %v327 = vrot.slane %v304, 6
    %v329 = vadd.f32 %v71, %v327
    %v330 = vxor.u32 %v329, 2147483648
    %v331 = vmul.f32 %v330, 1.442695
    %v332 = vpow.pop %v331
    %v333 = vadd.f32 %v332, 1.0
    %v334 = vrcp.pop %v333
    %v335 = vmul.f32 %v333, %v334
    %v336 = vsub.f32 1.0, %v335
    %v337 = vmul.f32 %v334, %v336
    %v338 = vadd.f32 %v334, %v337
    %vm339 = vweird.f32 %v333
    %vm340 = vweird.f32 %v334
    %vm341 = vmor %vm339, %vm340
    %v342 = vsel %vm341, %v334, %v338
    %v343 = vand.u32 2147483647, %v333
    %vm344 = vcmp.eq.f32.partialorder %v343, 8.507059e+37
    %v345 = vand.u32 %v333, 2147483648
    %v346 = vor.u32 1.1754944e-38, %v345
    %v347 = vsel %vm344, %v346, %v342
    %v348 = vmul.f32 1.0, %v347
    %v349 = vadd.f32 %v304, %v183
    %v351 = vrot.slane %v349, 6
    %352 = vrot.lane.b32.xlu0 %v351, 64
    %v353 = vpop.permute.xlu0 %352
    %v355 = vmul.f32 %v348, %v353
    %357 = vrot.lane.b32.xlu0 %v355, 64
    %v358 = vpop.permute.xlu0 %357
    %v360 = vadd.f32 %v71, %v358
    %v361 = vtanh.pop %v360
    %v362 = vsub.f32 1.0, %v348
    %364 = vrot.lane.b32.xlu0 %v361, 96
    %v365 = vpop.permute.xlu0 %364
    %v367 = vmul.f32 %v362, %v365
    %v368 = vrot.slane %v204, 6
    %v370 = vmul.f32 %v348, %v368
    %v371 = vadd.f32 %v367, %v370
    %v372 = vrot.slane %v304, 4
    %v374 = vadd.f32 %v74, %v372
    %v375 = vxor.u32 %v374, 2147483648
    %v376 = vmul.f32 %v375, 1.442695
    %v377 = vpow.pop %v376
    %v378 = vadd.f32 %v377, 1.0
    %v379 = vrcp.pop %v378
    %v380 = vmul.f32 %v378, %v379
    %v381 = vsub.f32 1.0, %v380
    %v382 = vmul.f32 %v379, %v381
    %v383 = vadd.f32 %v379, %v382
    %vm384 = vweird.f32 %v378
    %vm385 = vweird.f32 %v379
    %vm386 = vmor %vm384, %vm385
    %v387 = vsel %vm386, %v379, %v383
    %v388 = vand.u32 2147483647, %v378
    %vm389 = vcmp.eq.f32.partialorder %v388, 8.507059e+37
    %v390 = vand.u32 %v378, 2147483648
    %v391 = vor.u32 1.1754944e-38, %v390
    %v392 = vsel %vm389, %v391, %v387
    %v393 = vmul.f32 1.0, %v392
    %v395 = vrot.slane %v324, 4
    %v397 = vadd.f32 %v97, %v395
    %v398 = vxor.u32 %v397, 2147483648
    %v399 = vmul.f32 %v398, 1.442695
    %v400 = vpow.pop %v399
    %v401 = vadd.f32 %v400, 1.0
    %v402 = vrcp.pop %v401
    %v403 = vmul.f32 %v401, %v402
    %v404 = vsub.f32 1.0, %v403
    %v405 = vmul.f32 %v402, %v404
    %v406 = vadd.f32 %v402, %v405
    %vm407 = vweird.f32 %v401
    %vm408 = vweird.f32 %v402
    %vm409 = vmor %vm407, %vm408
    %v410 = vsel %vm409, %v402, %v406
    %v411 = vand.u32 2147483647, %v401
    %vm412 = vcmp.eq.f32.partialorder %v411, 8.507059e+37
    %v413 = vand.u32 %v401, 2147483648
    %v414 = vor.u32 1.1754944e-38, %v413
    %v415 = vsel %vm412, %v414, %v410
    %v416 = vmul.f32 1.0, %v415
    %v417 = vadd.f32 %v324, %v181
    %v419 = vrot.slane %v417, 4
    %420 = vrot.lane.b32.xlu0 %v419, 64
    %v421 = vpop.permute.xlu0 %420
    %v423 = vmul.f32 %v393, %v421
    %425 = vrot.lane.b32.xlu0 %v423, 64
    %v426 = vpop.permute.xlu0 %425
    %v428 = vadd.f32 %v97, %v426
    %v429 = vtanh.pop %v428
    %v430 = vsub.f32 1.0, %v416
    %432 = vrot.lane.b32.xlu0 %v429, 96
    %v433 = vpop.permute.xlu0 %432
    %v435 = vmul.f32 %v430, %v433
    %v436 = vrot.slane %v272, 2
    %v438 = vmul.f32 %v416, %v436
    %v439 = vadd.f32 %v435, %v438
    %441 = vrot.lane.b32.xlu0 %v371, 96
    %v442 = vpop.permute.xlu0 %441
    %v445 = vrot.slane %v439, 2
    %446 = vrot.lane.b32.xlu0 %v445, 32
    %v447 = vpop.permute.xlu0 %446
    %v449 = vsel %vm46, %v442, %v447
    %v451 = vrot.slane %v449, 2
    %v452 = vsel %vm116, %v451, 0
    %454 = vmatpush.msra.mxu0 0.0
    %455 = vmatpush.msra.mxu0 0.0
    %456 = vmatpush.msra.mxu0 0.0
    %457 = vmatpush.msra.mxu0 0.0
    %458 = vmatpush.msra.mxu0 0.0
    %459 = vmatpush.msra.mxu0 0.0
    %460 = vmatpush.msra.mxu0 0.0
    %461 = vmatpush.msra.mxu0 0.0
    %462 = vmatpush.msra.mxu0 %v113
    %463 = vmatpush.msra.mxu0 %v111
    %464 = vmatpush.msra.mxu0 %v109
    %465 = vmatpush.msra.mxu0 %v107
    %466 = vmatpush.msra.mxu0 %v105
    %467 = vmatpush.msra.mxu0 %v103
    %468 = vmatpush.msra.mxu0 %v101
    %469 = vmatpush.msra.mxu0 %v99
    %470 = vmatmul.f32.gmra.mxu0 %v452
    %v471 = vpop.f32.mrf.mxu0
    %v472 = vadd.f32 0.0, %v471
    %473 = vdwg.mxu0
    %474 = vmatpush.msra.mxu0 0.0
    %475 = vmatpush.msra.mxu0 0.0
    %476 = vmatpush.msra.mxu0 0.0
    %477 = vmatpush.msra.mxu0 0.0
    %478 = vmatpush.msra.mxu0 0.0
    %479 = vmatpush.msra.mxu0 0.0
    %480 = vmatpush.msra.mxu0 0.0
    %481 = vmatpush.msra.mxu0 0.0
    %482 = vmatpush.msra.mxu0 %v114
    %483 = vmatpush.msra.mxu0 %v112
    %484 = vmatpush.msra.mxu0 %v110
    %485 = vmatpush.msra.mxu0 %v108
    %486 = vmatpush.msra.mxu0 %v106
    %487 = vmatpush.msra.mxu0 %v104
    %488 = vmatpush.msra.mxu0 %v102
    %489 = vmatpush.msra.mxu0 %v100
    %490 = vmatmul.f32.gmra.mxu0 %v452
    %v491 = vpop.f32.mrf.mxu0
    %v492 = vadd.f32 0.0, %v491
    %493 = vdwg.mxu0
    %v495 = vrot.slane %v472, 4
    %v497 = vadd.f32 %v71, %v495
    %v498 = vxor.u32 %v497, 2147483648
    %v499 = vmul.f32 %v498, 1.442695
    %v500 = vpow.pop %v499
    %v501 = vadd.f32 %v500, 1.0
    %v502 = vrcp.pop %v501
    %v503 = vmul.f32 %v501, %v502
    %v504 = vsub.f32 1.0, %v503
    %v505 = vmul.f32 %v502, %v504
    %v506 = vadd.f32 %v502, %v505
    %vm507 = vweird.f32 %v501
    %vm508 = vweird.f32 %v502
    %vm509 = vmor %vm507, %vm508
    %v510 = vsel %vm509, %v502, %v506
    %v511 = vand.u32 2147483647, %v501
    %vm512 = vcmp.eq.f32.partialorder %v511, 8.507059e+37
    %v513 = vand.u32 %v501, 2147483648
    %v514 = vor.u32 1.1754944e-38, %v513
    %v515 = vsel %vm512, %v514, %v510
    %v516 = vmul.f32 1.0, %v515
    %v517 = vadd.f32 %v472, %v183
    %v519 = vrot.slane %v517, 4
    %520 = vrot.lane.b32.xlu0 %v519, 64
    %v521 = vpop.permute.xlu0 %520
    %v523 = vmul.f32 %v516, %v521
    %525 = vrot.lane.b32.xlu0 %v523, 64
    %v526 = vpop.permute.xlu0 %525
    %v528 = vadd.f32 %v71, %v526
    %v529 = vtanh.pop %v528
    %v530 = vsub.f32 1.0, %v516
    %532 = vrot.lane.b32.xlu0 %v529, 96
    %v533 = vpop.permute.xlu0 %532
    %v535 = vmul.f32 %v530, %v533
    %v536 = vrot.slane %v371, 6
    %v538 = vmul.f32 %v516, %v536
    %v539 = vadd.f32 %v535, %v538
    %v540 = vrot.slane %v472, 6
    %v542 = vadd.f32 %v74, %v540
    %v543 = vxor.u32 %v542, 2147483648
    %v544 = vmul.f32 %v543, 1.442695
    %v545 = vpow.pop %v544
    %v546 = vadd.f32 %v545, 1.0
    %v547 = vrcp.pop %v546
    %v548 = vmul.f32 %v546, %v547
    %v549 = vsub.f32 1.0, %v548
    %v550 = vmul.f32 %v547, %v549
    %v551 = vadd.f32 %v547, %v550
    %vm552 = vweird.f32 %v546
    %vm553 = vweird.f32 %v547
    %vm554 = vmor %vm552, %vm553
    %v555 = vsel %vm554, %v547, %v551
    %v556 = vand.u32 2147483647, %v546
    %vm557 = vcmp.eq.f32.partialorder %v556, 8.507059e+37
    %v558 = vand.u32 %v546, 2147483648
    %v559 = vor.u32 1.1754944e-38, %v558
    %v560 = vsel %vm557, %v559, %v555
    %v561 = vmul.f32 1.0, %v560
    %v563 = vrot.slane %v492, 6
    %v565 = vadd.f32 %v97, %v563
    %v566 = vxor.u32 %v565, 2147483648
    %v567 = vmul.f32 %v566, 1.442695
    %v568 = vpow.pop %v567
    %v569 = vadd.f32 %v568, 1.0
    %v570 = vrcp.pop %v569
    %v571 = vmul.f32 %v569, %v570
    %v572 = vsub.f32 1.0, %v571
    %v573 = vmul.f32 %v570, %v572
    %v574 = vadd.f32 %v570, %v573
    %vm575 = vweird.f32 %v569
    %vm576 = vweird.f32 %v570
    %vm577 = vmor %vm575, %vm576
    %v578 = vsel %vm577, %v570, %v574
    %v579 = vand.u32 2147483647, %v569
    %vm580 = vcmp.eq.f32.partialorder %v579, 8.507059e+37
    %v581 = vand.u32 %v569, 2147483648
    %v582 = vor.u32 1.1754944e-38, %v581
    %v583 = vsel %vm580, %v582, %v578
    %v584 = vmul.f32 1.0, %v583
    %v585 = vadd.f32 %v492, %v181
    %v587 = vrot.slane %v585, 6
    %588 = vrot.lane.b32.xlu0 %v587, 64
    %v589 = vpop.permute.xlu0 %588
    %v591 = vmul.f32 %v561, %v589
    %593 = vrot.lane.b32.xlu0 %v591, 64
    %v594 = vpop.permute.xlu0 %593
    %v596 = vadd.f32 %v97, %v594
    %v597 = vtanh.pop %v596
    %v598 = vsub.f32 1.0, %v584
    %600 = vrot.lane.b32.xlu0 %v597, 96
    %v601 = vpop.permute.xlu0 %600
    %v603 = vmul.f32 %v598, %v601
    %v605 = vmul.f32 %v584, %v445
    %v606 = vadd.f32 %v603, %v605
    %608 = vrot.lane.b32.xlu0 %v539, 96
    %v609 = vpop.permute.xlu0 %608
    %v612 = vrot.slane %v606, 6
    %613 = vrot.lane.b32.xlu0 %v612, 32
    %v614 = vpop.permute.xlu0 %613
    %v616 = vsel %vm46, %v609, %v614
    %v618 = vrot.slane %v616, 4
    %v619 = vsel %vm116, %v618, 0
    %621 = vmatpush.msra.mxu0 0.0
    %622 = vmatpush.msra.mxu0 0.0
    %623 = vmatpush.msra.mxu0 0.0
    %624 = vmatpush.msra.mxu0 0.0
    %625 = vmatpush.msra.mxu0 0.0
    %626 = vmatpush.msra.mxu0 0.0
    %627 = vmatpush.msra.mxu0 0.0
    %628 = vmatpush.msra.mxu0 0.0
    %629 = vmatpush.msra.mxu0 %v113
    %630 = vmatpush.msra.mxu0 %v111
    %631 = vmatpush.msra.mxu0 %v109
    %632 = vmatpush.msra.mxu0 %v107
    %633 = vmatpush.msra.mxu0 %v105
    %634 = vmatpush.msra.mxu0 %v103
    %635 = vmatpush.msra.mxu0 %v101
    %636 = vmatpush.msra.mxu0 %v99
    %637 = vmatmul.f32.gmra.mxu0 %v619
    %v638 = vpop.f32.mrf.mxu0
    %v639 = vadd.f32 0.0, %v638
    %640 = vdwg.mxu0
    %641 = vmatpush.msra.mxu0 0.0
    %642 = vmatpush.msra.mxu0 0.0
    %643 = vmatpush.msra.mxu0 0.0
    %644 = vmatpush.msra.mxu0 0.0
    %645 = vmatpush.msra.mxu0 0.0
    %646 = vmatpush.msra.mxu0 0.0
    %647 = vmatpush.msra.mxu0 0.0
    %648 = vmatpush.msra.mxu0 0.0
    %649 = vmatpush.msra.mxu0 %v114
    %650 = vmatpush.msra.mxu0 %v112
    %651 = vmatpush.msra.mxu0 %v110
    %652 = vmatpush.msra.mxu0 %v108
    %653 = vmatpush.msra.mxu0 %v106
    %654 = vmatpush.msra.mxu0 %v104
    %655 = vmatpush.msra.mxu0 %v102
    %656 = vmatpush.msra.mxu0 %v100
    %657 = vmatmul.f32.gmra.mxu0 %v619
    %v658 = vpop.f32.mrf.mxu0
    %v659 = vadd.f32 0.0, %v658
    %660 = vdwg.mxu0
    %v662 = vrot.slane %v639, 2
    %v664 = vadd.f32 %v71, %v662
    %v665 = vxor.u32 %v664, 2147483648
    %v666 = vmul.f32 %v665, 1.442695
    %v667 = vpow.pop %v666
    %v668 = vadd.f32 %v667, 1.0
    %v669 = vrcp.pop %v668
    %v670 = vmul.f32 %v668, %v669
    %v671 = vsub.f32 1.0, %v670
    %v672 = vmul.f32 %v669, %v671
    %v673 = vadd.f32 %v669, %v672
    %vm674 = vweird.f32 %v668
    %vm675 = vweird.f32 %v669
    %vm676 = vmor %vm674, %vm675
    %v677 = vsel %vm676, %v669, %v673
    %v678 = vand.u32 2147483647, %v668
    %vm679 = vcmp.eq.f32.partialorder %v678, 8.507059e+37
    %v680 = vand.u32 %v668, 2147483648
    %v681 = vor.u32 1.1754944e-38, %v680
    %v682 = vsel %vm679, %v681, %v677
    %v683 = vmul.f32 1.0, %v682
    %v684 = vadd.f32 %v639, %v183
    %v686 = vrot.slane %v684, 2
    %687 = vrot.lane.b32.xlu0 %v686, 64
    %v688 = vpop.permute.xlu0 %687
    %v690 = vmul.f32 %v683, %v688
    %692 = vrot.lane.b32.xlu0 %v690, 64
    %v693 = vpop.permute.xlu0 %692
    %v695 = vadd.f32 %v71, %v693
    %v696 = vtanh.pop %v695
    %v697 = vsub.f32 1.0, %v683
    %699 = vrot.lane.b32.xlu0 %v696, 96
    %v700 = vpop.permute.xlu0 %699
    %v702 = vmul.f32 %v697, %v700
    %v703 = vrot.slane %v539, 6
    %v705 = vmul.f32 %v683, %v703
    %v706 = vadd.f32 %v702, %v705
    %v707 = vadd.f32 %v74, %v639
    %v708 = vxor.u32 %v707, 2147483648
    %v709 = vmul.f32 %v708, 1.442695
    %v710 = vpow.pop %v709
    %v711 = vadd.f32 %v710, 1.0
    %v712 = vrcp.pop %v711
    %v713 = vmul.f32 %v711, %v712
    %v714 = vsub.f32 1.0, %v713
    %v715 = vmul.f32 %v712, %v714
    %v716 = vadd.f32 %v712, %v715
    %vm717 = vweird.f32 %v711
    %vm718 = vweird.f32 %v712
    %vm719 = vmor %vm717, %vm718
    %v720 = vsel %vm719, %v712, %v716
    %v721 = vand.u32 2147483647, %v711
    %vm722 = vcmp.eq.f32.partialorder %v721, 8.507059e+37
    %v723 = vand.u32 %v711, 2147483648
    %v724 = vor.u32 1.1754944e-38, %v723
    %v725 = vsel %vm722, %v724, %v720
    %v726 = vmul.f32 1.0, %v725
    %v727 = vadd.f32 %v97, %v659
    %v728 = vxor.u32 %v727, 2147483648
    %v729 = vmul.f32 %v728, 1.442695
    %v730 = vpow.pop %v729
    %v731 = vadd.f32 %v730, 1.0
    %v732 = vrcp.pop %v731
    %v733 = vmul.f32 %v731, %v732
    %v734 = vsub.f32 1.0, %v733
    %v735 = vmul.f32 %v732, %v734
    %v736 = vadd.f32 %v732, %v735
    %vm737 = vweird.f32 %v731
    %vm738 = vweird.f32 %v732
    %vm739 = vmor %vm737, %vm738
    %v740 = vsel %vm739, %v732, %v736
    %v741 = vand.u32 2147483647, %v731
    %vm742 = vcmp.eq.f32.partialorder %v741, 8.507059e+37
    %v743 = vand.u32 %v731, 2147483648
    %v744 = vor.u32 1.1754944e-38, %v743
    %v745 = vsel %vm742, %v744, %v740
    %v746 = vmul.f32 1.0, %v745
    %v747 = vadd.f32 %v659, %v181
    %749 = vrot.lane.b32.xlu0 %v747, 64
    %v750 = vpop.permute.xlu0 %749
    %v752 = vmul.f32 %v726, %v750
    %754 = vrot.lane.b32.xlu0 %v752, 64
    %v755 = vpop.permute.xlu0 %754
    %v757 = vadd.f32 %v97, %v755
    %v758 = vtanh.pop %v757
    %v759 = vsub.f32 1.0, %v746
    %761 = vrot.lane.b32.xlu0 %v758, 96
    %v762 = vpop.permute.xlu0 %761
    %v764 = vmul.f32 %v759, %v762
    %v765 = vrot.slane %v606, 2
    %v767 = vmul.f32 %v746, %v765
    %v768 = vadd.f32 %v764, %v767
    %770 = vrot.lane.b32.xlu0 %v706, 96
    %v771 = vpop.permute.xlu0 %770
    %v774 = vrot.slane %v768, 2
    %775 = vrot.lane.b32.xlu0 %v774, 32
    %v776 = vpop.permute.xlu0 %775
    %v778 = vsel %vm46, %v771, %v776
    %v780 = vrot.slane %v778, 6
    %v781 = vsel %vm116, %v780, 0
    %783 = vmatpush.msra.mxu0 0.0
    %784 = vmatpush.msra.mxu0 0.0
    %785 = vmatpush.msra.mxu0 0.0
    %786 = vmatpush.msra.mxu0 0.0
    %787 = vmatpush.msra.mxu0 0.0
    %788 = vmatpush.msra.mxu0 0.0
    %789 = vmatpush.msra.mxu0 0.0
    %790 = vmatpush.msra.mxu0 0.0
    %791 = vmatpush.msra.mxu0 %v113
    %792 = vmatpush.msra.mxu0 %v111
    %793 = vmatpush.msra.mxu0 %v109
    %794 = vmatpush.msra.mxu0 %v107
    %795 = vmatpush.msra.mxu0 %v105
    %796 = vmatpush.msra.mxu0 %v103
    %797 = vmatpush.msra.mxu0 %v101
    %798 = vmatpush.msra.mxu0 %v99
    %799 = vmatmul.f32.gmra.mxu0 %v781
    %v800 = vpop.f32.mrf.mxu0
    %v801 = vadd.f32 0.0, %v800
    %802 = vdwg.mxu0
    %803 = vmatpush.msra.mxu0 0.0
    %804 = vmatpush.msra.mxu0 0.0
    %805 = vmatpush.msra.mxu0 0.0
    %806 = vmatpush.msra.mxu0 0.0
    %807 = vmatpush.msra.mxu0 0.0
    %808 = vmatpush.msra.mxu0 0.0
    %809 = vmatpush.msra.mxu0 0.0
    %810 = vmatpush.msra.mxu0 0.0
    %811 = vmatpush.msra.mxu0 %v114
    %812 = vmatpush.msra.mxu0 %v112
    %813 = vmatpush.msra.mxu0 %v110
    %814 = vmatpush.msra.mxu0 %v108
    %815 = vmatpush.msra.mxu0 %v106
    %816 = vmatpush.msra.mxu0 %v104
    %817 = vmatpush.msra.mxu0 %v102
    %818 = vmatpush.msra.mxu0 %v100
    %819 = vmatmul.f32.gmra.mxu0 %v781
    %v820 = vpop.f32.mrf.mxu0
    %v821 = vadd.f32 0.0, %v820
    %822 = vdwg.mxu0
    %v823 = vadd.f32 %v74, %v801
    %v824 = vxor.u32 %v823, 2147483648
    %v825 = vmul.f32 %v824, 1.442695
    %v826 = vpow.pop %v825
    %v827 = vadd.f32 %v826, 1.0
    %v828 = vrcp.pop %v827
    %v829 = vmul.f32 %v827, %v828
    %v830 = vsub.f32 1.0, %v829
    %v831 = vmul.f32 %v828, %v830
    %v832 = vadd.f32 %v828, %v831
    %vm833 = vweird.f32 %v827
    %vm834 = vweird.f32 %v828
    %vm835 = vmor %vm833, %vm834
    %v836 = vsel %vm835, %v828, %v832
    %v837 = vand.u32 2147483647, %v827
    %vm838 = vcmp.eq.f32.partialorder %v837, 8.507059e+37
    %v839 = vand.u32 %v827, 2147483648
    %v840 = vor.u32 1.1754944e-38, %v839
    %v841 = vsel %vm838, %v840, %v836
    %v842 = vmul.f32 1.0, %v841
    %v843 = vadd.f32 %v801, %v183
    %845 = vrot.lane.b32.xlu0 %v843, 64
    %v846 = vpop.permute.xlu0 %845
    %v848 = vmul.f32 %v842, %v846
    %850 = vrot.lane.b32.xlu0 %v848, 64
    %v851 = vpop.permute.xlu0 %850
    %v853 = vadd.f32 %v74, %v851
    %v854 = vtanh.pop %v853
    %v855 = vsub.f32 1.0, %v842
    %857 = vrot.lane.b32.xlu0 %v854, 96
    %v858 = vpop.permute.xlu0 %857
    %v860 = vmul.f32 %v855, %v858
    %v861 = vrot.slane %v706, 6
    %v863 = vmul.f32 %v842, %v861
    %v864 = vadd.f32 %v860, %v863
    %v866 = vrot.slane %v801, 2
    %v868 = vadd.f32 %v71, %v866
    %v869 = vxor.u32 %v868, 2147483648
    %v870 = vmul.f32 %v869, 1.442695
    %v871 = vpow.pop %v870
    %v872 = vadd.f32 %v871, 1.0
    %v873 = vrcp.pop %v872
    %v874 = vmul.f32 %v872, %v873
    %v875 = vsub.f32 1.0, %v874
    %v876 = vmul.f32 %v873, %v875
    %v877 = vadd.f32 %v873, %v876
    %vm878 = vweird.f32 %v872
    %vm879 = vweird.f32 %v873
    %vm880 = vmor %vm878, %vm879
    %v881 = vsel %vm880, %v873, %v877
    %v882 = vand.u32 2147483647, %v872
    %vm883 = vcmp.eq.f32.partialorder %v882, 8.507059e+37
    %v884 = vand.u32 %v872, 2147483648
    %v885 = vor.u32 1.1754944e-38, %v884
    %v886 = vsel %vm883, %v885, %v881
    %v887 = vmul.f32 1.0, %v886
    %v889 = vrot.slane %v821, 2
    %v891 = vadd.f32 %v94, %v889
    %v892 = vxor.u32 %v891, 2147483648
    %v893 = vmul.f32 %v892, 1.442695
    %v894 = vpow.pop %v893
    %v895 = vadd.f32 %v894, 1.0
    %v896 = vrcp.pop %v895
    %v897 = vmul.f32 %v895, %v896
    %v898 = vsub.f32 1.0, %v897
    %v899 = vmul.f32 %v896, %v898
    %v900 = vadd.f32 %v896, %v899
    %vm901 = vweird.f32 %v895
    %vm902 = vweird.f32 %v896
    %vm903 = vmor %vm901, %vm902
    %v904 = vsel %vm903, %v896, %v900
    %v905 = vand.u32 2147483647, %v895
    %vm906 = vcmp.eq.f32.partialorder %v905, 8.507059e+37
    %v907 = vand.u32 %v895, 2147483648
    %v908 = vor.u32 1.1754944e-38, %v907
    %v909 = vsel %vm906, %v908, %v904
    %v910 = vmul.f32 1.0, %v909
    %v911 = vadd.f32 %v821, %v181
    %v913 = vrot.slane %v911, 2
    %914 = vrot.lane.b32.xlu0 %v913, 64
    %v915 = vpop.permute.xlu0 %914
    %v917 = vmul.f32 %v887, %v915
    %919 = vrot.lane.b32.xlu0 %v917, 64
    %v920 = vpop.permute.xlu0 %919
    %v922 = vadd.f32 %v94, %v920
    %v923 = vtanh.pop %v922
    %v924 = vsub.f32 1.0, %v910
    %926 = vrot.lane.b32.xlu0 %v923, 96
    %v927 = vpop.permute.xlu0 %926
    %v929 = vmul.f32 %v924, %v927
    %v931 = vmul.f32 %v910, %v774
    %v932 = vadd.f32 %v929, %v931
    %934 = vrot.lane.b32.xlu0 %v864, 96
    %v935 = vpop.permute.xlu0 %934
    %v938 = vrot.slane %v932, 6
    %939 = vrot.lane.b32.xlu0 %v938, 32
    %v940 = vpop.permute.xlu0 %939
    %v942 = vsel %vm46, %v935, %v940
    %v944 = vsel %vm116, %v942, 0
    %946 = vmatpush.msra.mxu0 0.0
    %947 = vmatpush.msra.mxu0 0.0
    %948 = vmatpush.msra.mxu0 0.0
    %949 = vmatpush.msra.mxu0 0.0
    %950 = vmatpush.msra.mxu0 0.0
    %951 = vmatpush.msra.mxu0 0.0
    %952 = vmatpush.msra.mxu0 0.0
    %953 = vmatpush.msra.mxu0 0.0
    %954 = vmatpush.msra.mxu0 %v113
    %955 = vmatpush.msra.mxu0 %v111
    %956 = vmatpush.msra.mxu0 %v109
    %957 = vmatpush.msra.mxu0 %v107
    %958 = vmatpush.msra.mxu0 %v105
    %959 = vmatpush.msra.mxu0 %v103
    %960 = vmatpush.msra.mxu0 %v101
    %961 = vmatpush.msra.mxu0 %v99
    %962 = vmatmul.f32.gmra.mxu0 %v944
    %v963 = vpop.f32.mrf.mxu0
    %v964 = vadd.f32 0.0, %v963
    %965 = vdwg.mxu0
    %966 = vmatpush.msra.mxu0 0.0
    %967 = vmatpush.msra.mxu0 0.0
    %968 = vmatpush.msra.mxu0 0.0
    %969 = vmatpush.msra.mxu0 0.0
    %970 = vmatpush.msra.mxu0 0.0
    %971 = vmatpush.msra.mxu0 0.0
    %972 = vmatpush.msra.mxu0 0.0
    %973 = vmatpush.msra.mxu0 0.0
    %974 = vmatpush.msra.mxu0 %v114
    %975 = vmatpush.msra.mxu0 %v112
    %976 = vmatpush.msra.mxu0 %v110
    %977 = vmatpush.msra.mxu0 %v108
    %978 = vmatpush.msra.mxu0 %v106
    %979 = vmatpush.msra.mxu0 %v104
    %980 = vmatpush.msra.mxu0 %v102
    %981 = vmatpush.msra.mxu0 %v100
    %982 = vmatmul.f32.gmra.mxu0 %v944
    %v983 = vpop.f32.mrf.mxu0
    %v984 = vadd.f32 0.0, %v983
    %985 = vdwg.mxu0
    %v987 = vrot.slane %v964, 6
    %v989 = vadd.f32 %v74, %v987
    %v990 = vxor.u32 %v989, 2147483648
    %v991 = vmul.f32 %v990, 1.442695
    %v992 = vpow.pop %v991
    %v993 = vadd.f32 %v992, 1.0
    %v994 = vrcp.pop %v993
    %v995 = vmul.f32 %v993, %v994
    %v996 = vsub.f32 1.0, %v995
    %v997 = vmul.f32 %v994, %v996
    %v998 = vadd.f32 %v994, %v997
    %vm999 = vweird.f32 %v993
    %vm1000 = vweird.f32 %v994
    %vm1001 = vmor %vm999, %vm1000
    %v1002 = vsel %vm1001, %v994, %v998
    %v1003 = vand.u32 2147483647, %v993
    %vm1004 = vcmp.eq.f32.partialorder %v1003, 8.507059e+37
    %v1005 = vand.u32 %v993, 2147483648
    %v1006 = vor.u32 1.1754944e-38, %v1005
    %v1007 = vsel %vm1004, %v1006, %v1002
    %v1008 = vmul.f32 1.0, %v1007
    %v1009 = vadd.f32 %v964, %v183
    %v1011 = vrot.slane %v1009, 6
    %1012 = vrot.lane.b32.xlu0 %v1011, 64
    %v1013 = vpop.permute.xlu0 %1012
    %v1015 = vmul.f32 %v1008, %v1013
    %1017 = vrot.lane.b32.xlu0 %v1015, 64
    %v1018 = vpop.permute.xlu0 %1017
    %v1020 = vadd.f32 %v74, %v1018
    %v1021 = vtanh.pop %v1020
    %v1022 = vsub.f32 1.0, %v1008
    %1024 = vrot.lane.b32.xlu0 %v1021, 96
    %v1025 = vpop.permute.xlu0 %1024
    %v1027 = vmul.f32 %v1022, %v1025
    %v1028 = vrot.slane %v864, 6
    %v1030 = vmul.f32 %v1008, %v1028
    %v1031 = vadd.f32 %v1027, %v1030
    %v1032 = vrot.slane %v964, 4
    %v1034 = vadd.f32 %v71, %v1032
    %v1035 = vxor.u32 %v1034, 2147483648
    %v1036 = vmul.f32 %v1035, 1.442695
    %v1037 = vpow.pop %v1036
    %v1038 = vadd.f32 %v1037, 1.0
    %v1039 = vrcp.pop %v1038
    %v1040 = vmul.f32 %v1038, %v1039
    %v1041 = vsub.f32 1.0, %v1040
    %v1042 = vmul.f32 %v1039, %v1041
    %v1043 = vadd.f32 %v1039, %v1042
    %vm1044 = vweird.f32 %v1038
    %vm1045 = vweird.f32 %v1039
    %vm1046 = vmor %vm1044, %vm1045
    %v1047 = vsel %vm1046, %v1039, %v1043
    %v1048 = vand.u32 2147483647, %v1038
    %vm1049 = vcmp.eq.f32.partialorder %v1048, 8.507059e+37
    %v1050 = vand.u32 %v1038, 2147483648
    %v1051 = vor.u32 1.1754944e-38, %v1050
    %v1052 = vsel %vm1049, %v1051, %v1047
    %v1053 = vmul.f32 1.0, %v1052
    %v1055 = vrot.slane %v984, 4
    %v1057 = vadd.f32 %v94, %v1055
    %v1058 = vxor.u32 %v1057, 2147483648
    %v1059 = vmul.f32 %v1058, 1.442695
    %v1060 = vpow.pop %v1059
    %v1061 = vadd.f32 %v1060, 1.0
    %v1062 = vrcp.pop %v1061
    %v1063 = vmul.f32 %v1061, %v1062
    %v1064 = vsub.f32 1.0, %v1063
    %v1065 = vmul.f32 %v1062, %v1064
    %v1066 = vadd.f32 %v1062, %v1065
    %vm1067 = vweird.f32 %v1061
    %vm1068 = vweird.f32 %v1062
    %vm1069 = vmor %vm1067, %vm1068
    %v1070 = vsel %vm1069, %v1062, %v1066
    %v1071 = vand.u32 2147483647, %v1061
    %vm1072 = vcmp.eq.f32.partialorder %v1071, 8.507059e+37
    %v1073 = vand.u32 %v1061, 2147483648
    %v1074 = vor.u32 1.1754944e-38, %v1073
    %v1075 = vsel %vm1072, %v1074, %v1070
    %v1076 = vmul.f32 1.0, %v1075
    %v1077 = vadd.f32 %v984, %v181
    %v1079 = vrot.slane %v1077, 4
    %1080 = vrot.lane.b32.xlu0 %v1079, 64
    %v1081 = vpop.permute.xlu0 %1080
    %v1083 = vmul.f32 %v1053, %v1081
    %1085 = vrot.lane.b32.xlu0 %v1083, 64
    %v1086 = vpop.permute.xlu0 %1085
    %v1088 = vadd.f32 %v94, %v1086
    %v1089 = vtanh.pop %v1088
    %v1090 = vsub.f32 1.0, %v1076
    %1092 = vrot.lane.b32.xlu0 %v1089, 96
    %v1093 = vpop.permute.xlu0 %1092
    %v1095 = vmul.f32 %v1090, %v1093
    %v1096 = vrot.slane %v932, 2
    %v1098 = vmul.f32 %v1076, %v1096
    %v1099 = vadd.f32 %v1095, %v1098
    %1101 = vrot.lane.b32.xlu0 %v1031, 96
    %v1102 = vpop.permute.xlu0 %1101
    %v1105 = vrot.slane %v1099, 2
    %1106 = vrot.lane.b32.xlu0 %v1105, 32
    %v1107 = vpop.permute.xlu0 %1106
    %v1109 = vsel %vm46, %v1102, %v1107
    %v1111 = vrot.slane %v1109, 2
    %v1112 = vsel %vm116, %v1111, 0
    %1114 = vmatpush.msra.mxu0 0.0
    %1115 = vmatpush.msra.mxu0 0.0
    %1116 = vmatpush.msra.mxu0 0.0
    %1117 = vmatpush.msra.mxu0 0.0
    %1118 = vmatpush.msra.mxu0 0.0
    %1119 = vmatpush.msra.mxu0 0.0
    %1120 = vmatpush.msra.mxu0 0.0
    %1121 = vmatpush.msra.mxu0 0.0
    %1122 = vmatpush.msra.mxu0 %v113
    %1123 = vmatpush.msra.mxu0 %v111
    %1124 = vmatpush.msra.mxu0 %v109
    %1125 = vmatpush.msra.mxu0 %v107
    %1126 = vmatpush.msra.mxu0 %v105
    %1127 = vmatpush.msra.mxu0 %v103
    %1128 = vmatpush.msra.mxu0 %v101
    %1129 = vmatpush.msra.mxu0 %v99
    %1130 = vmatmul.f32.gmra.mxu0 %v1112
    %v1131 = vpop.f32.mrf.mxu0
    %v1132 = vadd.f32 0.0, %v1131
    %1133 = vdwg.mxu0
    %1134 = vmatpush.msra.mxu0 0.0
    %1135 = vmatpush.msra.mxu0 0.0
    %1136 = vmatpush.msra.mxu0 0.0
    %1137 = vmatpush.msra.mxu0 0.0
    %1138 = vmatpush.msra.mxu0 0.0
    %1139 = vmatpush.msra.mxu0 0.0
    %1140 = vmatpush.msra.mxu0 0.0
    %1141 = vmatpush.msra.mxu0 0.0
    %1142 = vmatpush.msra.mxu0 %v114
    %1143 = vmatpush.msra.mxu0 %v112
    %1144 = vmatpush.msra.mxu0 %v110
    %1145 = vmatpush.msra.mxu0 %v108
    %1146 = vmatpush.msra.mxu0 %v106
    %1147 = vmatpush.msra.mxu0 %v104
    %1148 = vmatpush.msra.mxu0 %v102
    %1149 = vmatpush.msra.mxu0 %v100
    %1150 = vmatmul.f32.gmra.mxu0 %v1112
    %v1151 = vpop.f32.mrf.mxu0
    %v1152 = vadd.f32 0.0, %v1151
    %1153 = vdwg.mxu0
    %v1155 = vrot.slane %v1132, 4
    %v1157 = vadd.f32 %v74, %v1155
    %v1158 = vxor.u32 %v1157, 2147483648
    %v1159 = vmul.f32 %v1158, 1.442695
    %v1160 = vpow.pop %v1159
    %v1161 = vadd.f32 %v1160, 1.0
    %v1162 = vrcp.pop %v1161
    %v1163 = vmul.f32 %v1161, %v1162
    %v1164 = vsub.f32 1.0, %v1163
    %v1165 = vmul.f32 %v1162, %v1164
    %v1166 = vadd.f32 %v1162, %v1165
    %vm1167 = vweird.f32 %v1161
    %vm1168 = vweird.f32 %v1162
    %vm1169 = vmor %vm1167, %vm1168
    %v1170 = vsel %vm1169, %v1162, %v1166
    %v1171 = vand.u32 2147483647, %v1161
    %vm1172 = vcmp.eq.f32.partialorder %v1171, 8.507059e+37
    %v1173 = vand.u32 %v1161, 2147483648
    %v1174 = vor.u32 1.1754944e-38, %v1173
    %v1175 = vsel %vm1172, %v1174, %v1170
    %v1176 = vmul.f32 1.0, %v1175
    %v1177 = vadd.f32 %v1132, %v183
    %v1179 = vrot.slane %v1177, 4
    %1180 = vrot.lane.b32.xlu0 %v1179, 64
    %v1181 = vpop.permute.xlu0 %1180
    %v1183 = vmul.f32 %v1176, %v1181
    %1185 = vrot.lane.b32.xlu0 %v1183, 64
    %v1186 = vpop.permute.xlu0 %1185
    %v1188 = vadd.f32 %v74, %v1186
    %v1189 = vtanh.pop %v1188
    %v1190 = vsub.f32 1.0, %v1176
    %1192 = vrot.lane.b32.xlu0 %v1189, 96
    %v1193 = vpop.permute.xlu0 %1192
    %v1195 = vmul.f32 %v1190, %v1193
    %v1196 = vrot.slane %v1031, 6
    %v1198 = vmul.f32 %v1176, %v1196
    %v1199 = vadd.f32 %v1195, %v1198
    %v1200 = vrot.slane %v1132, 6
    %v1202 = vadd.f32 %v71, %v1200
    %v1203 = vxor.u32 %v1202, 2147483648
    %v1204 = vmul.f32 %v1203, 1.442695
    %v1205 = vpow.pop %v1204
    %v1206 = vadd.f32 %v1205, 1.0
    %v1207 = vrcp.pop %v1206
    %v1208 = vmul.f32 %v1206, %v1207
    %v1209 = vsub.f32 1.0, %v1208
    %v1210 = vmul.f32 %v1207, %v1209
    %v1211 = vadd.f32 %v1207, %v1210
    %vm1212 = vweird.f32 %v1206
    %vm1213 = vweird.f32 %v1207
    %vm1214 = vmor %vm1212, %vm1213
    %v1215 = vsel %vm1214, %v1207, %v1211
    %v1216 = vand.u32 2147483647, %v1206
    %vm1217 = vcmp.eq.f32.partialorder %v1216, 8.507059e+37
    %v1218 = vand.u32 %v1206, 2147483648
    %v1219 = vor.u32 1.1754944e-38, %v1218
    %v1220 = vsel %vm1217, %v1219, %v1215
    %v1221 = vmul.f32 1.0, %v1220
    %v1223 = vrot.slane %v1152, 6
    %v1225 = vadd.f32 %v94, %v1223
    %v1226 = vxor.u32 %v1225, 2147483648
    %v1227 = vmul.f32 %v1226, 1.442695
    %v1228 = vpow.pop %v1227
    %v1229 = vadd.f32 %v1228, 1.0
    %v1230 = vrcp.pop %v1229
    %v1231 = vmul.f32 %v1229, %v1230
    %v1232 = vsub.f32 1.0, %v1231
    %v1233 = vmul.f32 %v1230, %v1232
    %v1234 = vadd.f32 %v1230, %v1233
    %vm1235 = vweird.f32 %v1229
    %vm1236 = vweird.f32 %v1230
    %vm1237 = vmor %vm1235, %vm1236
    %v1238 = vsel %vm1237, %v1230, %v1234
    %v1239 = vand.u32 2147483647, %v1229
    %vm1240 = vcmp.eq.f32.partialorder %v1239, 8.507059e+37
    %v1241 = vand.u32 %v1229, 2147483648
    %v1242 = vor.u32 1.1754944e-38, %v1241
    %v1243 = vsel %vm1240, %v1242, %v1238
    %v1244 = vmul.f32 1.0, %v1243
    %v1245 = vadd.f32 %v1152, %v181
    %v1247 = vrot.slane %v1245, 6
    %1248 = vrot.lane.b32.xlu0 %v1247, 64
    %v1249 = vpop.permute.xlu0 %1248
    %v1251 = vmul.f32 %v1221, %v1249
    %1253 = vrot.lane.b32.xlu0 %v1251, 64
    %v1254 = vpop.permute.xlu0 %1253
    %v1256 = vadd.f32 %v94, %v1254
    %v1257 = vtanh.pop %v1256
    %v1258 = vsub.f32 1.0, %v1244
    %1260 = vrot.lane.b32.xlu0 %v1257, 96
    %v1261 = vpop.permute.xlu0 %1260
    %v1263 = vmul.f32 %v1258, %v1261
    %v1265 = vmul.f32 %v1244, %v1105
    %v1266 = vadd.f32 %v1263, %v1265
    %1268 = vrot.lane.b32.xlu0 %v1199, 96
    %v1269 = vpop.permute.xlu0 %1268
    %v1272 = vrot.slane %v1266, 6
    %1273 = vrot.lane.b32.xlu0 %v1272, 32
    %v1274 = vpop.permute.xlu0 %1273
    %v1276 = vsel %vm46, %v1269, %v1274
    %v1278 = vrot.slane %v1276, 4
    %v1279 = vsel %vm116, %v1278, 0
    %1281 = vmatpush.msra.mxu0 0.0
    %1282 = vmatpush.msra.mxu0 0.0
    %1283 = vmatpush.msra.mxu0 0.0
    %1284 = vmatpush.msra.mxu0 0.0
    %1285 = vmatpush.msra.mxu0 0.0
    %1286 = vmatpush.msra.mxu0 0.0
    %1287 = vmatpush.msra.mxu0 0.0
    %1288 = vmatpush.msra.mxu0 0.0
    %1289 = vmatpush.msra.mxu0 %v113
    %1290 = vmatpush.msra.mxu0 %v111
    %1291 = vmatpush.msra.mxu0 %v109
    %1292 = vmatpush.msra.mxu0 %v107
    %1293 = vmatpush.msra.mxu0 %v105
    %1294 = vmatpush.msra.mxu0 %v103
    %1295 = vmatpush.msra.mxu0 %v101
    %1296 = vmatpush.msra.mxu0 %v99
    %1297 = vmatmul.f32.gmra.mxu0 %v1279
    %v1298 = vpop.f32.mrf.mxu0
    %v1299 = vadd.f32 0.0, %v1298
    %1300 = vdwg.mxu0
    %1301 = vmatpush.msra.mxu0 0.0
    %1302 = vmatpush.msra.mxu0 0.0
    %1303 = vmatpush.msra.mxu0 0.0
    %1304 = vmatpush.msra.mxu0 0.0
    %1305 = vmatpush.msra.mxu0 0.0
    %1306 = vmatpush.msra.mxu0 0.0
    %1307 = vmatpush.msra.mxu0 0.0
    %1308 = vmatpush.msra.mxu0 0.0
    %1309 = vmatpush.msra.mxu0 %v114
    %1310 = vmatpush.msra.mxu0 %v112
    %1311 = vmatpush.msra.mxu0 %v110
    %1312 = vmatpush.msra.mxu0 %v108
    %1313 = vmatpush.msra.mxu0 %v106
    %1314 = vmatpush.msra.mxu0 %v104
    %1315 = vmatpush.msra.mxu0 %v102
    %1316 = vmatpush.msra.mxu0 %v100
    %1317 = vmatmul.f32.gmra.mxu0 %v1279
    %v1318 = vpop.f32.mrf.mxu0
    %v1319 = vadd.f32 0.0, %v1318
    %1320 = vdwg.mxu0
    %v1322 = vrot.slane %v1299, 2
    %v1324 = vadd.f32 %v74, %v1322
    %v1325 = vxor.u32 %v1324, 2147483648
    %v1326 = vmul.f32 %v1325, 1.442695
    %v1327 = vpow.pop %v1326
    %v1328 = vadd.f32 %v1327, 1.0
    %v1329 = vrcp.pop %v1328
    %v1330 = vmul.f32 %v1328, %v1329
    %v1331 = vsub.f32 1.0, %v1330
    %v1332 = vmul.f32 %v1329, %v1331
    %v1333 = vadd.f32 %v1329, %v1332
    %vm1334 = vweird.f32 %v1328
    %vm1335 = vweird.f32 %v1329
    %vm1336 = vmor %vm1334, %vm1335
    %v1337 = vsel %vm1336, %v1329, %v1333
    %v1338 = vand.u32 2147483647, %v1328
    %vm1339 = vcmp.eq.f32.partialorder %v1338, 8.507059e+37
    %v1340 = vand.u32 %v1328, 2147483648
    %v1341 = vor.u32 1.1754944e-38, %v1340
    %v1342 = vsel %vm1339, %v1341, %v1337
    %v1343 = vmul.f32 1.0, %v1342
    %v1344 = vadd.f32 %v1299, %v183
    %v1346 = vrot.slane %v1344, 2
    %1347 = vrot.lane.b32.xlu0 %v1346, 64
    %v1348 = vpop.permute.xlu0 %1347
    %v1350 = vmul.f32 %v1343, %v1348
    %1352 = vrot.lane.b32.xlu0 %v1350, 64
    %v1353 = vpop.permute.xlu0 %1352
    %v1355 = vadd.f32 %v74, %v1353
    %v1356 = vtanh.pop %v1355
    %v1357 = vsub.f32 1.0, %v1343
    %1359 = vrot.lane.b32.xlu0 %v1356, 96
    %v1360 = vpop.permute.xlu0 %1359
    %v1362 = vmul.f32 %v1357, %v1360
    %v1363 = vrot.slane %v1199, 6
    %v1365 = vmul.f32 %v1343, %v1363
    %v1366 = vadd.f32 %v1362, %v1365
    %v1367 = vadd.f32 %v71, %v1299
    %v1368 = vxor.u32 %v1367, 2147483648
    %v1369 = vmul.f32 %v1368, 1.442695
    %v1370 = vpow.pop %v1369
    %v1371 = vadd.f32 %v1370, 1.0
    %v1372 = vrcp.pop %v1371
    %v1373 = vmul.f32 %v1371, %v1372
    %v1374 = vsub.f32 1.0, %v1373
    %v1375 = vmul.f32 %v1372, %v1374
    %v1376 = vadd.f32 %v1372, %v1375
    %vm1377 = vweird.f32 %v1371
    %vm1378 = vweird.f32 %v1372
    %vm1379 = vmor %vm1377, %vm1378
    %v1380 = vsel %vm1379, %v1372, %v1376
    %v1381 = vand.u32 2147483647, %v1371
    %vm1382 = vcmp.eq.f32.partialorder %v1381, 8.507059e+37
    %v1383 = vand.u32 %v1371, 2147483648
    %v1384 = vor.u32 1.1754944e-38, %v1383
    %v1385 = vsel %vm1382, %v1384, %v1380
    %v1386 = vmul.f32 1.0, %v1385
    %v1387 = vadd.f32 %v94, %v1319
    %v1388 = vxor.u32 %v1387, 2147483648
    %v1389 = vmul.f32 %v1388, 1.442695
    %v1390 = vpow.pop %v1389
    %v1391 = vadd.f32 %v1390, 1.0
    %v1392 = vrcp.pop %v1391
    %v1393 = vmul.f32 %v1391, %v1392
    %v1394 = vsub.f32 1.0, %v1393
    %v1395 = vmul.f32 %v1392, %v1394
    %v1396 = vadd.f32 %v1392, %v1395
    %vm1397 = vweird.f32 %v1391
    %vm1398 = vweird.f32 %v1392
    %vm1399 = vmor %vm1397, %vm1398
    %v1400 = vsel %vm1399, %v1392, %v1396
    %v1401 = vand.u32 2147483647, %v1391
    %vm1402 = vcmp.eq.f32.partialorder %v1401, 8.507059e+37
    %v1403 = vand.u32 %v1391, 2147483648
    %v1404 = vor.u32 1.1754944e-38, %v1403
    %v1405 = vsel %vm1402, %v1404, %v1400
    %v1406 = vmul.f32 1.0, %v1405
    %v1407 = vadd.f32 %v1319, %v181
    %1409 = vrot.lane.b32.xlu0 %v1407, 64
    %v1410 = vpop.permute.xlu0 %1409
    %v1412 = vmul.f32 %v1386, %v1410
    %1414 = vrot.lane.b32.xlu0 %v1412, 64
    %v1415 = vpop.permute.xlu0 %1414
    %v1417 = vadd.f32 %v94, %v1415
    %v1418 = vtanh.pop %v1417
    %v1419 = vsub.f32 1.0, %v1406
    %1421 = vrot.lane.b32.xlu0 %v1418, 96
    %v1422 = vpop.permute.xlu0 %1421
    %v1424 = vmul.f32 %v1419, %v1422
    %v1425 = vrot.slane %v1266, 2
    %v1427 = vmul.f32 %v1406, %v1425
    %v1428 = vadd.f32 %v1424, %v1427
    %1430 = vrot.lane.b32.xlu0 %v1428, 32
    %v1431 = vpop.permute.xlu0 %1430
    %v1433 = vsel %vm46, %v275, %v1431
    %1434 = vrot.lane.b32.xlu0 %v1266, 32
    %v1435 = vpop.permute.xlu0 %1434
    %v1437 = vsel %vm46, %v442, %v1435
    %1438 = vrot.lane.b32.xlu0 %v1099, 32
    %v1439 = vpop.permute.xlu0 %1438
    %v1441 = vsel %vm46, %v609, %v1439
    %1442 = vrot.lane.b32.xlu0 %v932, 32
    %v1443 = vpop.permute.xlu0 %1442
    %v1445 = vsel %vm46, %v771, %v1443
    %1446 = vrot.lane.b32.xlu0 %v768, 32
    %v1447 = vpop.permute.xlu0 %1446
    %v1449 = vsel %vm46, %v935, %v1447
    %1450 = vrot.lane.b32.xlu0 %v606, 32
    %v1451 = vpop.permute.xlu0 %1450
    %v1453 = vsel %vm46, %v1102, %v1451
    %1454 = vrot.lane.b32.xlu0 %v439, 32
    %v1455 = vpop.permute.xlu0 %1454
    %v1457 = vsel %vm46, %v1269, %v1455
    %1459 = vrot.lane.b32.xlu0 %v1366, 96
    %v1460 = vpop.permute.xlu0 %1459
    %1462 = vrot.lane.b32.xlu0 %v272, 32
    %v1463 = vpop.permute.xlu0 %1462
    %v1465 = vsel %vm46, %v1460, %v1463
    %v1467 = vrot.slane %v1433, 1
    %1470 = vst [vmem:[#allocation1] sm:$0xff] %v1437
    %s1471 = scalar_lea.vmem [#allocation1], 2
    %v1472 = vld [vmem:[%s1471] ss:$9 sm:$0xff]
    %s1473 = scalar_lea.vmem [#allocation1], 3
    %v1474 = vld [vmem:[%s1473] ss:$9 sm:$0xff]
    %1476 = vst [vmem:[#allocation1] sm:$0xff] %v1441
    %s1477 = scalar_lea.vmem [#allocation1], 4
    %v1478 = vld [vmem:[%s1477] ss:$9 sm:$0xff]
    %s1479 = scalar_lea.vmem [#allocation1], 5
    %v1480 = vld [vmem:[%s1479] ss:$9 sm:$0xff]
    %1482 = vst [vmem:[#allocation1] sm:$0xff] %v1445
    %s1483 = scalar_lea.vmem [#allocation1], 6
    %v1484 = vld [vmem:[%s1483] ss:$9 sm:$0xff]
    %s1485 = scalar_lea.vmem [#allocation1], 7
    %v1486 = vld [vmem:[%s1485] ss:$9 sm:$0xff]
    %v1488 = vrot.slane %v1449, 1
    %1490 = vst [vmem:[#allocation1] sm:$0xff] %v1453
    %s1491 = scalar_lea.vmem [#allocation1], 2
    %v1492 = vld [vmem:[%s1491] ss:$9 sm:$0xff]
    %s1493 = scalar_lea.vmem [#allocation1], 3
    %v1494 = vld [vmem:[%s1493] ss:$9 sm:$0xff]
    %1496 = vst [vmem:[#allocation1] sm:$0xff] %v1457
    %s1497 = scalar_lea.vmem [#allocation1], 4
    %v1498 = vld [vmem:[%s1497] ss:$9 sm:$0xff]
    %s1499 = scalar_lea.vmem [#allocation1], 5
    %v1500 = vld [vmem:[%s1499] ss:$9 sm:$0xff]
    %1502 = vst [vmem:[#allocation1] sm:$0xff] %v1465
    %s1503 = scalar_lea.vmem [#allocation1], 6
    %v1504 = vld [vmem:[%s1503] ss:$9 sm:$0xff]
    %s1505 = scalar_lea.vmem [#allocation1], 7
    %v1506 = vld [vmem:[%s1505] ss:$9 sm:$0xff]
    %v1507 = vperm.slane %v1472, 0
    %v1508 = vperm.slane %v1474, 0
    %v1511 = vperm.slane %v1478, 0
    %v1512 = vperm.slane %v1480, 0
    %v1515 = vperm.slane %v1484, 0
    %v1516 = vperm.slane %v1486, 0
    %v1519 = vperm.slane %v1449, 0
    %v1520 = vperm.slane %v1488, 0
    %v1523 = vperm.slane %v1492, 0
    %v1524 = vperm.slane %v1494, 0
    %v1527 = vperm.slane %v1498, 0
    %v1528 = vperm.slane %v1500, 0
    %v1531 = vperm.slane %v1504, 0
    %v1532 = vperm.slane %v1506, 0
    %vm1535 = vcmask 1040384
    %v1536 = vsel %vm1535, %v1433, %v1507
    %v1537 = vsel %vm1535, %v1467, %v1508
    %vm1538 = vcmask 1041408
    %v1539 = vsel %vm1538, %v1536, %v1511
    %v1540 = vsel %vm1538, %v1537, %v1512
    %vm1541 = vcmask 1042432
    %v1542 = vsel %vm1541, %v1539, %v1515
    %v1543 = vsel %vm1541, %v1540, %v1516
    %vm1544 = vcmask 1043456
    %v1545 = vsel %vm1544, %v1542, %v1519
    %v1546 = vsel %vm1544, %v1543, %v1520
    %vm1547 = vcmask 1044480
    %v1548 = vsel %vm1547, %v1545, %v1523
    %v1549 = vsel %vm1547, %v1546, %v1524
    %vm1550 = vcmask 1045504
    %v1551 = vsel %vm1550, %v1548, %v1527
    %v1552 = vsel %vm1550, %v1549, %v1528
    %vm1553 = vcmask 1046528
    %v1554 = vsel %vm1553, %v1551, %v1531
    %v1555 = vsel %vm1553, %v1552, %v1532
    %1556 = vst.msk [vmem:[#allocation2] sm:$0xff] %vm116, %v1554
    %1557 = vst.msk [vmem:[#allocation2 + $0x8] sm:$0xff] %vm116, %v1555
    %v1558 = vrot.slane %v1428, 2
    %1559 = vrot.lane.b32.xlu0 %v1558, 32
    %v1560 = vpop.permute.xlu0 %1559
    %v1562 = vsel %vm46, %v1460, %v1560
    %v1563 = vld [vmem:[%s5] sm:$0xff]
    %v1564 = vld [vmem:[%s5 + $0x8] sm:$0xff]
    %v1565 = vld [vmem:[%s5 + $0x10] sm:$0xff]
    %v1566 = vld [vmem:[%s5 + $0x18] sm:$0xff]
    %v1567 = vld [vmem:[%s5 + $0x20] sm:$0xff]
    %v1568 = vld [vmem:[%s5 + $0x28] sm:$0xff]
    %v1569 = vld [vmem:[%s5 + $0x30] sm:$0xff]
    %v1570 = vld [vmem:[%s5 + $0x38] sm:$0xff]
    %v1571 = vld [vmem:[%s6] sm:$0x1]
    %v1573 = vperm.slane %v1571, 0
    %v1576 = vrot.slane %v1562, 6
    %v1577 = vsel %vm116, %v1576, 0
    %1579 = vmatpush.msra.mxu0 0.0
    %1580 = vmatpush.msra.mxu0 0.0
    %1581 = vmatpush.msra.mxu0 0.0
    %1582 = vmatpush.msra.mxu0 0.0
    %1583 = vmatpush.msra.mxu0 0.0
    %1584 = vmatpush.msra.mxu0 0.0
    %1585 = vmatpush.msra.mxu0 0.0
    %1586 = vmatpush.msra.mxu0 0.0
    %1587 = vmatpush.msra.mxu0 %v1570
    %1588 = vmatpush.msra.mxu0 %v1569
    %1589 = vmatpush.msra.mxu0 %v1568
    %1590 = vmatpush.msra.mxu0 %v1567
    %1591 = vmatpush.msra.mxu0 %v1566
    %1592 = vmatpush.msra.mxu0 %v1565
    %1593 = vmatpush.msra.mxu0 %v1564
    %1594 = vmatpush.msra.mxu0 %v1563
    %1595 = vmatmul.f32.gmra.mxu0 %v1577
    %v1596 = vpop.f32.mrf.mxu0
    %v1597 = vadd.f32 %v1573, %v1596
    %1598 = vdwg.mxu0
    %v1599 = vtanh.pop %v1597
    %vm1600 = vcmask 254976
    %1601 = vst.msk [vmem:[#allocation4] sm:$0x3] %vm1600, %v1599
    // Predicated region
    $region30: #{encoder_forward.1} parent=1 // pred_check
      _
    $region31: #{encoder_forward.1} parent=1 // pred_check_branch
      %1603 = sbr.rel (0) target = $region33
    $region32: #{encoder_forward.1} parent=1 // pred_region
      %1605 = vsyncadd [#allocation3], 0
      %s1606 = sshll.u32 [#allocation2], 4
      %s1607 = int_to_ptr.vmem [resolvable:$true] %s1606
      %s1608 = sshll.u32 %s7, 4
      %s1609 = int_to_ptr.hbm [resolvable:$true] %s1608
      %1614 = dma.vmem_to_hbm [thread:$0]  %s1607, 256, %s1609, [#allocation3], 128, 128, 8
    $region33: #{encoder_forward.1} parent=1 // pred_fallthru
      _
    // Predicated region
    $region34: #{encoder_forward.1} parent=1 // pred_check
      _
    $region35: #{encoder_forward.1} parent=1 // pred_check_branch
      %1616 = sbr.rel (0) target = $region37
    $region36: #{encoder_forward.1} parent=1 // pred_region
      %1618 = vsyncadd [#allocation5], 0
      %s1620 = sshll.u32 [#allocation4], 4
      %s1621 = int_to_ptr.vmem [resolvable:$true] %s1620
      %s1622 = sshll.u32 %s8, 4
      %s1623 = int_to_ptr.hbm [resolvable:$true] %s1622
      %1625 = dma.vmem_to_hbm [thread:$0]  %s1621, 32, %s1623, [#allocation5]
    $region37: #{encoder_forward.1} parent=1 // pred_fallthru
      _
    // Predicated region
    $region38: #{encoder_forward.1} parent=1 // pred_check
      _
    $region39: #{encoder_forward.1} parent=1 // pred_check_branch
      %1627 = sbr.rel (0) target = $region41
    $region40: #{encoder_forward.1} parent=1 // pred_region
      %1629 = dma.done [#allocation3], 256
    $region41: #{encoder_forward.1} parent=1 // pred_fallthru
      _
    // Predicated region
    $region42: #{encoder_forward.1} parent=1 // pred_check
      _
    $region43: #{encoder_forward.1} parent=1 // pred_check_branch
      %1631 = sbr.rel (0) target = $region45
    $region44: #{encoder_forward.1} parent=1 // pred_region
      %1633 = dma.done [#allocation5], 32
    $region45: #{encoder_forward.1} parent=1 // pred_fallthru
      _
    %1634 = vsyncpa [#allocation3], 1
    %1635 = vsyncpa [#allocation5], 1

</llo_original>
